<compile_context>
chip_gen: v6e
topology: v6e:2x2x1
jax: 0.10.0
libtpu: 0.0.40
codegen_flags: <defaults>
</compile_context>

<pallas_src>
import jax
import jax.numpy as jnp
from jax import lax
from jax.experimental import pallas as pl
from jax.experimental.pallas import tpu as pltpu

_BN_EPS = 1e-5
_TILE_MAX = 1024  # row-tile upper bound; VMEM per step stays well under 1 MiB


def _round_up(x, m):
    return ((x + m - 1) // m) * m


def _branch_step(p, t, x_ref, w_ref, b_ref, g_ref, bt_ref, o_ref,
                 s1_ref, s2_ref, *, n_rows, tile):
    """One grid step of Linear -> ReLU -> BatchNorm1d(batch stats) for one branch.

    p == 0 : statistics pass  (accumulate sum(y), sum(y*y) over valid rows)
    p == 1 : apply pass       (recompute y, normalize with global stats, write out)
    """
    n_tiles = -(-n_rows // tile)  # static per-branch tile count

    def _compute_y():
        # Linear (+bias) on the MXU, f32 accumulation, then ReLU.
        y = jnp.dot(x_ref[...], w_ref[...], preferred_element_type=jnp.float32)
        return jnp.maximum(y + b_ref[...], 0.0)

    @pl.when((p == 0) & (t == 0))
    def _():
        s1_ref[...] = jnp.zeros_like(s1_ref)
        s2_ref[...] = jnp.zeros_like(s2_ref)

    @pl.when((p == 0) & (t < n_tiles))
    def _():
        y = _compute_y()
        # Mask rows past the logical end (reads in a partial last tile are undefined).
        rows = lax.broadcasted_iota(jnp.int32, (tile, 1), 0) + t * tile
        ym = jnp.where(rows < n_rows, y, 0.0)
        s1_ref[...] += jnp.sum(ym, axis=0, keepdims=True)
        s2_ref[...] += jnp.sum(ym * ym, axis=0, keepdims=True)

    @pl.when((p == 1) & (t < n_tiles))
    def _():
        # Single-pass batch statistics (biased variance, eps=1e-5).  Fine at 1e-3
        # tolerance for O(1) activations; switch to a centered pass if scales grow.
        inv_n = jnp.float32(1.0 / n_rows)
        mean = s1_ref[...] * inv_n
        var = jnp.maximum(s2_ref[...] * inv_n - mean * mean, 0.0)
        scale = g_ref[...] * lax.rsqrt(var + _BN_EPS)
        shift = bt_ref[...] - mean * scale
        y = _compute_y()  # K <= 12: recomputing beats storing/reloading y from HBM
        o_ref[...] = (y * scale + shift).astype(o_ref.dtype)


@jax.jit
def embedding_forward(params, n_feat, e_feat):
    """Both Linear->ReLU->BN branches in one fused, row-gridded Pallas kernel."""
    n_n, k_n = n_feat.shape
    n_e, k_e = e_feat.shape
    d_n = params["nw"].shape[1]
    d_e = params["ew"].shape[1]

    tile = min(_TILE_MAX, _round_up(max(n_n, n_e), 8))
    t_n = -(-n_n // tile)
    t_e = -(-n_e // tile)
    n_tiles = max(t_n, t_e)

    def kernel(nx, nw, nb, ng, nbt, ex, ew, eb, eg, ebt,
               no, eo, ns1, ns2, es1, es2):
        p = pl.program_id(0)
        t = pl.program_id(1)
        _branch_step(p, t, nx, nw, nb, ng, nbt, no, ns1, ns2,
                     n_rows=n_n, tile=tile)
        _branch_step(p, t, ex, ew, eb, eg, ebt, eo, es1, es2,
                     n_rows=n_e, tile=tile)

    def x_map(tb):
        # Clamp to the branch's last tile when the other branch has more tiles.
        return lambda p, t: (jnp.minimum(t, tb - 1), 0)

    def out_map(tb):
        # Park on block 0 during the stats pass (nothing is written there);
        # clamp to the branch's last tile in the apply pass.
        return lambda p, t: (jnp.where(p == 0, 0, jnp.minimum(t, tb - 1)), 0)

    def param_map():
        return lambda p, t: (0, 0)  # params stay VMEM-resident (block index constant)

    # Advisory cost hint (matmul done twice: stats pass + apply pass).
    flops = (2 * 2 * (n_n * k_n * d_n + n_e * k_e * d_e)
             + 10 * (n_n * d_n + n_e * d_e))
    bytes_accessed = 4 * (2 * (n_feat.size + e_feat.size)
                          + params["nw"].size + params["ew"].size
                          + 4 * (d_n + d_e)
                          + n_n * d_n + n_e * d_e)

    grid_spec = pltpu.PrefetchScalarGridSpec(
        num_scalar_prefetch=0,
        grid=(2, n_tiles),
        in_specs=[
            pl.BlockSpec((tile, k_n), x_map(t_n)),
            pl.BlockSpec((k_n, d_n), param_map()),
            pl.BlockSpec((1, d_n), param_map()),
            pl.BlockSpec((1, d_n), param_map()),
            pl.BlockSpec((1, d_n), param_map()),
            pl.BlockSpec((tile, k_e), x_map(t_e)),
            pl.BlockSpec((k_e, d_e), param_map()),
            pl.BlockSpec((1, d_e), param_map()),
            pl.BlockSpec((1, d_e), param_map()),
            pl.BlockSpec((1, d_e), param_map()),
        ],
        out_specs=(
            pl.BlockSpec((tile, d_n), out_map(t_n)),
            pl.BlockSpec((tile, d_e), out_map(t_e)),
        ),
        scratch_shapes=[
            pltpu.VMEM((1, d_n), jnp.float32),  # node-branch sum(y)
            pltpu.VMEM((1, d_n), jnp.float32),  # node-branch sum(y*y)
            pltpu.VMEM((1, d_e), jnp.float32),  # edge-branch sum(y)
            pltpu.VMEM((1, d_e), jnp.float32),  # edge-branch sum(y*y)
        ],
    )

    return pl.pallas_call(
        kernel,
        out_shape=(jax.ShapeDtypeStruct((n_n, d_n), jnp.float32),
                   jax.ShapeDtypeStruct((n_e, d_e), jnp.float32)),
        grid_spec=grid_spec,
        cost_estimate=pl.CostEstimate(flops=flops,
                                      transcendentals=d_n + d_e,
                                      bytes_accessed=bytes_accessed),
        compiler_params=pltpu.CompilerParams(
            # Both axes are sequential: the pass axis orders stats->apply and the row
            # axis accumulates into shared VMEM scratch.
            dimension_semantics=("arbitrary", "arbitrary"),
            # Live blocks per step are a few hundred KiB; 32 MiB keeps headroom on
            # every generation (v7x physical VMEM is 64 MiB).
            vmem_limit_bytes=32 * 1024 * 1024,
        ),
    )(n_feat, params["nw"], params["nb"], params["ngamma"], params["nbeta"],
      e_feat, params["ew"], params["eb"], params["egamma"], params["ebeta"])


def init_embedding_params(key, node_dim, e_dim, nemb_dim, eemb_dim):
    """Deterministic synthetic parameters matching the PyTorch module's shapes."""
    k = jax.random.split(key, 4)

    def linear_init(kw, fan_in, fan_out):
        bound = 1.0 / jnp.sqrt(fan_in)
        kw1, kw2 = jax.random.split(kw)
        w = jax.random.uniform(kw1, (fan_in, fan_out), jnp.float32, -bound, bound)
        b = jax.random.uniform(kw2, (1, fan_out), jnp.float32, -bound, bound)
        return w, b

    nw, nb = linear_init(k[0], node_dim, nemb_dim)
    ew, eb = linear_init(k[1], e_dim, eemb_dim)
    ngamma = jnp.ones((1, nemb_dim), jnp.float32) + 0.01 * jax.random.normal(k[2], (1, nemb_dim))
    nbeta = jnp.zeros((1, nemb_dim), jnp.float32)
    egamma = jnp.ones((1, eemb_dim), jnp.float32) + 0.01 * jax.random.normal(k[3], (1, eemb_dim))
    ebeta = jnp.zeros((1, eemb_dim), jnp.float32)
    return dict(nw=nw, nb=nb, ngamma=ngamma, nbeta=nbeta,
                ew=ew, eb=eb, egamma=egamma, ebeta=ebeta)


if __name__ == "__main__":
    key = jax.random.PRNGKey(0)
    kp, kn, ke = jax.random.split(key, 3)

    # Small synthetic sizes consistent with the module's forward:
    # n_feat: [num_nodes, node_dim], e_feat: [num_edges, e_dim]
    num_nodes, node_dim, nemb_dim = 16, 8, 32
    num_edges, e_dim, eemb_dim = 24, 12, 32

    params = init_embedding_params(kp, node_dim, e_dim, nemb_dim, eemb_dim)
    n_feat = jax.random.normal(kn, (num_nodes, node_dim), jnp.float32)
    e_feat = jax.random.normal(ke, (num_edges, e_dim), jnp.float32)

    n_emb, e_emb = embedding_forward(params, n_feat, e_feat)
    jax.block_until_ready(n_emb)
    jax.block_until_ready(e_emb)

    # Pure-JAX reference of the exact module math (Linear -> ReLU -> BN with batch stats).
    def ref_branch(x, w, b, gamma, beta):
        y = jnp.maximum(x @ w + b, 0.0)
        mean = jnp.mean(y, axis=0, keepdims=True)
        var = jnp.mean((y - mean) ** 2, axis=0, keepdims=True)
        return (y - mean) / jnp.sqrt(var + _BN_EPS) * gamma + beta

    ref_n = ref_branch(n_feat, params["nw"], params["nb"], params["ngamma"], params["nbeta"])
    ref_e = ref_branch(e_feat, params["ew"], params["eb"], params["egamma"], params["ebeta"])
    assert n_emb.shape == (num_nodes, nemb_dim) and e_emb.shape == (num_edges, eemb_dim)
    assert jnp.allclose(n_emb, ref_n, atol=1e-3, rtol=1e-3)
    assert jnp.allclose(e_emb, ref_e, atol=1e-3, rtol=1e-3)

    print("KERNEL_OK")
</pallas_src>

<mosaic_0001>
module attributes {stable_mosaic.version = 11 : i64} {
  func.func @kernel(%arg0: i32, %arg1: i32, %arg2: memref<24x8xf32, #tpu.memory_space<vmem>>, %arg3: memref<8x32xf32, #tpu.memory_space<vmem>>, %arg4: memref<1x32xf32, #tpu.memory_space<vmem>>, %arg5: memref<1x32xf32, #tpu.memory_space<vmem>>, %arg6: memref<1x32xf32, #tpu.memory_space<vmem>>, %arg7: memref<24x12xf32, #tpu.memory_space<vmem>>, %arg8: memref<12x32xf32, #tpu.memory_space<vmem>>, %arg9: memref<1x32xf32, #tpu.memory_space<vmem>>, %arg10: memref<1x32xf32, #tpu.memory_space<vmem>>, %arg11: memref<1x32xf32, #tpu.memory_space<vmem>>, %arg12: memref<24x32xf32, #tpu.memory_space<vmem>>, %arg13: memref<24x32xf32, #tpu.memory_space<vmem>>, %arg14: memref<1x32xf32, #tpu.memory_space<vmem>>, %arg15: memref<1x32xf32, #tpu.memory_space<vmem>>, %arg16: memref<1x32xf32, #tpu.memory_space<vmem>>, %arg17: memref<1x32xf32, #tpu.memory_space<vmem>>) attributes {dimension_semantics = [#tpu.dimension_semantics<arbitrary>, #tpu.dimension_semantics<arbitrary>], iteration_bounds = array<i64: 2, 1>, scalar_prefetch = 0 : i64, scratch_operands = 4 : i64, tpu.core_type = #tpu.core_type<tc>, window_params = [{transform_indices = @transform_0, window_bounds = array<i64: 24, 8>}, {pipeline_mode = #tpu.pipeline_mode<synchronous>, transform_indices = @transform_1, window_bounds = array<i64: 8, 32>}, {pipeline_mode = #tpu.pipeline_mode<synchronous>, transform_indices = @transform_2, window_bounds = array<i64: 1, 32>}, {pipeline_mode = #tpu.pipeline_mode<synchronous>, transform_indices = @transform_3, window_bounds = array<i64: 1, 32>}, {pipeline_mode = #tpu.pipeline_mode<synchronous>, transform_indices = @transform_4, window_bounds = array<i64: 1, 32>}, {transform_indices = @transform_5, window_bounds = array<i64: 24, 12>}, {pipeline_mode = #tpu.pipeline_mode<synchronous>, transform_indices = @transform_6, window_bounds = array<i64: 12, 32>}, {pipeline_mode = #tpu.pipeline_mode<synchronous>, transform_indices = @transform_7, window_bounds = array<i64: 1, 32>}, {pipeline_mode = #tpu.pipeline_mode<synchronous>, transform_indices = @transform_8, window_bounds = array<i64: 1, 32>}, {pipeline_mode = #tpu.pipeline_mode<synchronous>, transform_indices = @transform_9, window_bounds = array<i64: 1, 32>}, {transform_indices = @transform_10, window_bounds = array<i64: 24, 32>}, {transform_indices = @transform_11, window_bounds = array<i64: 24, 32>}]} {
    %c0_i32 = arith.constant 0 : i32
    %0 = arith.cmpi eq, %arg0, %c0_i32 : i32
    %c0_i32_0 = arith.constant 0 : i32
    %1 = arith.cmpi eq, %arg1, %c0_i32_0 : i32
    %2 = arith.andi %0, %1 : i1
    %3 = arith.extui %2 : i1 to i32
    %c0_i32_1 = arith.constant 0 : i32
    %4 = arith.cmpi ne, %3, %c0_i32_1 : i32
    scf.if %4 {
      %cst = arith.constant 0.000000e+00 : f32
      %30 = vector.broadcast %cst : f32 to vector<1x32xf32>
      %c0 = arith.constant 0 : index
      %c0_16 = arith.constant 0 : index
      %31 = vector.load %arg14[%c0, %c0_16] : memref<1x32xf32, #tpu.memory_space<vmem>>, vector<1x32xf32>
      tpu.vector_store %arg14[%c0, %c0_16], %30 {strides = array<i32>} : memref<1x32xf32, #tpu.memory_space<vmem>>, vector<1x32xf32>,
      %cst_17 = arith.constant 0.000000e+00 : f32
      %32 = vector.broadcast %cst_17 : f32 to vector<1x32xf32>
      %c0_18 = arith.constant 0 : index
      %c0_19 = arith.constant 0 : index
      %33 = vector.load %arg15[%c0_18, %c0_19] : memref<1x32xf32, #tpu.memory_space<vmem>>, vector<1x32xf32>
      tpu.vector_store %arg15[%c0_18, %c0_19], %32 {strides = array<i32>} : memref<1x32xf32, #tpu.memory_space<vmem>>, vector<1x32xf32>,
    } else {
    }
    %c0_i32_2 = arith.constant 0 : i32
    %5 = arith.cmpi eq, %arg0, %c0_i32_2 : i32
    %c1_i32 = arith.constant 1 : i32
    %6 = arith.cmpi slt, %arg1, %c1_i32 : i32
    %7 = arith.andi %5, %6 : i1
    %8 = arith.extui %7 : i1 to i32
    %c0_i32_3 = arith.constant 0 : i32
    %9 = arith.cmpi ne, %8, %c0_i32_3 : i32
    scf.if %9 {
      %c0 = arith.constant 0 : index
      %c0_16 = arith.constant 0 : index
      %30 = vector.load %arg2[%c0, %c0_16] : memref<24x8xf32, #tpu.memory_space<vmem>>, vector<24x8xf32>
      %c0_17 = arith.constant 0 : index
      %c0_18 = arith.constant 0 : index
      %31 = vector.load %arg3[%c0_17, %c0_18] : memref<8x32xf32, #tpu.memory_space<vmem>>, vector<8x32xf32>
      %cst = arith.constant dense<0.000000e+00> : vector<24x32xf32>
      %32 = tpu.matmul %30, %31, %cst {dimension_numbers = #tpu.dot_dimension_numbers<[1], [0], [0], [1], [0, 0, 1, 1], [], []>} : vector<24x8xf32>, vector<8x32xf32>, vector<24x32xf32> -> vector<24x32xf32>
      %c0_19 = arith.constant 0 : index
      %c0_20 = arith.constant 0 : index
      %33 = vector.load %arg4[%c0_19, %c0_20] : memref<1x32xf32, #tpu.memory_space<vmem>>, vector<1x32xf32>
      %34 = vector.broadcast %33 : vector<1x32xf32> to vector<24x32xf32>
      %35 = arith.addf %32, %34 : vector<24x32xf32>
      %cst_21 = arith.constant 0.000000e+00 : f32
      %36 = vector.broadcast %cst_21 : f32 to vector<24x32xf32>
      %37 = arith.maximumf %35, %36 : vector<24x32xf32>
      %38 = tpu.iota {dimensions = array<i32: 0>} : vector<24x1xi32>
      %c24_i32 = arith.constant 24 : i32
      %39 = arith.muli %arg1, %c24_i32 : i32
      %40 = vector.broadcast %39 : i32 to vector<24x1xi32>
      %41 = arith.addi %38, %40 : vector<24x1xi32>
      %c16_i32 = arith.constant 16 : i32
      %42 = vector.broadcast %c16_i32 : i32 to vector<24x1xi32>
      %43 = arith.cmpi slt, %41, %42 : vector<24x1xi32>
      %cst_22 = arith.constant 0.000000e+00 : f32
      %44 = vector.shape_cast %43 : vector<24x1xi1> to vector<24x1xi1>
      %45 = vector.broadcast %44 : vector<24x1xi1> to vector<24x32xi1>
      %46 = vector.broadcast %cst_22 : f32 to vector<24x32xf32>
      %47 = arith.select %45, %37, %46 : vector<24x32xi1>, vector<24x32xf32>
      %c0_23 = arith.constant 0 : index
      %c0_24 = arith.constant 0 : index
      %48 = vector.load %arg14[%c0_23, %c0_24] : memref<1x32xf32, #tpu.memory_space<vmem>>, vector<1x32xf32>
      %cst_25 = arith.constant dense<0.000000e+00> : vector<32xf32>
      %49 = vector.multi_reduction <add>, %47, %cst_25 [0] : vector<24x32xf32> to vector<32xf32>
      %50 = vector.shape_cast %49 : vector<32xf32> to vector<1x32xf32>
      %51 = arith.addf %48, %50 : vector<1x32xf32>
      %c0_26 = arith.constant 0 : index
      %c0_27 = arith.constant 0 : index
      %52 = vector.load %arg14[%c0_26, %c0_27] : memref<1x32xf32, #tpu.memory_space<vmem>>, vector<1x32xf32>
      tpu.vector_store %arg14[%c0_26, %c0_27], %51 {strides = array<i32>} : memref<1x32xf32, #tpu.memory_space<vmem>>, vector<1x32xf32>,
      %c0_28 = arith.constant 0 : index
      %c0_29 = arith.constant 0 : index
      %53 = vector.load %arg15[%c0_28, %c0_29] : memref<1x32xf32, #tpu.memory_space<vmem>>, vector<1x32xf32>
      %54 = arith.mulf %47, %47 : vector<24x32xf32>
      %cst_30 = arith.constant dense<0.000000e+00> : vector<32xf32>
      %55 = vector.multi_reduction <add>, %54, %cst_30 [0] : vector<24x32xf32> to vector<32xf32>
      %56 = vector.shape_cast %55 : vector<32xf32> to vector<1x32xf32>
      %57 = arith.addf %53, %56 : vector<1x32xf32>
      %c0_31 = arith.constant 0 : index
      %c0_32 = arith.constant 0 : index
      %58 = vector.load %arg15[%c0_31, %c0_32] : memref<1x32xf32, #tpu.memory_space<vmem>>, vector<1x32xf32>
      tpu.vector_store %arg15[%c0_31, %c0_32], %57 {strides = array<i32>} : memref<1x32xf32, #tpu.memory_space<vmem>>, vector<1x32xf32>,
    } else {
    }
    %c1_i32_4 = arith.constant 1 : i32
    %10 = arith.cmpi eq, %arg0, %c1_i32_4 : i32
    %c1_i32_5 = arith.constant 1 : i32
    %11 = arith.cmpi slt, %arg1, %c1_i32_5 : i32
    %12 = arith.andi %10, %11 : i1
    %13 = arith.extui %12 : i1 to i32
    %c0_i32_6 = arith.constant 0 : i32
    %14 = arith.cmpi ne, %13, %c0_i32_6 : i32
    scf.if %14 {
      %c0 = arith.constant 0 : index
      %c0_16 = arith.constant 0 : index
      %30 = vector.load %arg14[%c0, %c0_16] : memref<1x32xf32, #tpu.memory_space<vmem>>, vector<1x32xf32>
      %cst = arith.constant 6.250000e-02 : f32
      %31 = vector.broadcast %cst : f32 to vector<1x32xf32>
      %32 = arith.mulf %30, %31 : vector<1x32xf32>
      %c0_17 = arith.constant 0 : index
      %c0_18 = arith.constant 0 : index
      %33 = vector.load %arg15[%c0_17, %c0_18] : memref<1x32xf32, #tpu.memory_space<vmem>>, vector<1x32xf32>
      %cst_19 = arith.constant 6.250000e-02 : f32
      %34 = vector.broadcast %cst_19 : f32 to vector<1x32xf32>
      %35 = arith.mulf %33, %34 : vector<1x32xf32>
      %36 = arith.mulf %32, %32 : vector<1x32xf32>
      %37 = arith.subf %35, %36 : vector<1x32xf32>
      %cst_20 = arith.constant 0.000000e+00 : f32
      %38 = vector.broadcast %cst_20 : f32 to vector<1x32xf32>
      %39 = arith.maximumf %37, %38 : vector<1x32xf32>
      %c0_21 = arith.constant 0 : index
      %c0_22 = arith.constant 0 : index
      %40 = vector.load %arg5[%c0_21, %c0_22] : memref<1x32xf32, #tpu.memory_space<vmem>>, vector<1x32xf32>
      %cst_23 = arith.constant 9.99999974E-6 : f32
      %41 = vector.broadcast %cst_23 : f32 to vector<1x32xf32>
      %42 = arith.addf %39, %41 : vector<1x32xf32>
      %43 = math.rsqrt %42 : vector<1x32xf32>
      %44 = arith.mulf %40, %43 : vector<1x32xf32>
      %c0_24 = arith.constant 0 : index
      %c0_25 = arith.constant 0 : index
      %45 = vector.load %arg6[%c0_24, %c0_25] : memref<1x32xf32, #tpu.memory_space<vmem>>, vector<1x32xf32>
      %46 = arith.mulf %32, %44 : vector<1x32xf32>
      %47 = arith.subf %45, %46 : vector<1x32xf32>
      %c0_26 = arith.constant 0 : index
      %c0_27 = arith.constant 0 : index
      %48 = vector.load %arg2[%c0_26, %c0_27] : memref<24x8xf32, #tpu.memory_space<vmem>>, vector<24x8xf32>
      %c0_28 = arith.constant 0 : index
      %c0_29 = arith.constant 0 : index
      %49 = vector.load %arg3[%c0_28, %c0_29] : memref<8x32xf32, #tpu.memory_space<vmem>>, vector<8x32xf32>
      %cst_30 = arith.constant dense<0.000000e+00> : vector<24x32xf32>
      %50 = tpu.matmul %48, %49, %cst_30 {dimension_numbers = #tpu.dot_dimension_numbers<[1], [0], [0], [1], [0, 0, 1, 1], [], []>} : vector<24x8xf32>, vector<8x32xf32>, vector<24x32xf32> -> vector<24x32xf32>
      %c0_31 = arith.constant 0 : index
      %c0_32 = arith.constant 0 : index
      %51 = vector.load %arg4[%c0_31, %c0_32] : memref<1x32xf32, #tpu.memory_space<vmem>>, vector<1x32xf32>
      %52 = vector.broadcast %51 : vector<1x32xf32> to vector<24x32xf32>
      %53 = arith.addf %50, %52 : vector<24x32xf32>
      %cst_33 = arith.constant 0.000000e+00 : f32
      %54 = vector.broadcast %cst_33 : f32 to vector<24x32xf32>
      %55 = arith.maximumf %53, %54 : vector<24x32xf32>
      %56 = vector.broadcast %44 : vector<1x32xf32> to vector<24x32xf32>
      %57 = arith.mulf %55, %56 : vector<24x32xf32>
      %58 = vector.broadcast %47 : vector<1x32xf32> to vector<24x32xf32>
      %59 = arith.addf %57, %58 : vector<24x32xf32>
      %c0_34 = arith.constant 0 : index
      %c0_35 = arith.constant 0 : index
      %60 = vector.load %arg12[%c0_34, %c0_35] : memref<24x32xf32, #tpu.memory_space<vmem>>, vector<24x32xf32>
      tpu.vector_store %arg12[%c0_34, %c0_35], %59 {strides = array<i32>} : memref<24x32xf32, #tpu.memory_space<vmem>>, vector<24x32xf32>,
    } else {
    }
    %c0_i32_7 = arith.constant 0 : i32
    %15 = arith.cmpi eq, %arg0, %c0_i32_7 : i32
    %c0_i32_8 = arith.constant 0 : i32
    %16 = arith.cmpi eq, %arg1, %c0_i32_8 : i32
    %17 = arith.andi %15, %16 : i1
    %18 = arith.extui %17 : i1 to i32
    %c0_i32_9 = arith.constant 0 : i32
    %19 = arith.cmpi ne, %18, %c0_i32_9 : i32
    scf.if %19 {
      %cst = arith.constant 0.000000e+00 : f32
      %30 = vector.broadcast %cst : f32 to vector<1x32xf32>
      %c0 = arith.constant 0 : index
      %c0_16 = arith.constant 0 : index
      %31 = vector.load %arg16[%c0, %c0_16] : memref<1x32xf32, #tpu.memory_space<vmem>>, vector<1x32xf32>
      tpu.vector_store %arg16[%c0, %c0_16], %30 {strides = array<i32>} : memref<1x32xf32, #tpu.memory_space<vmem>>, vector<1x32xf32>,
      %cst_17 = arith.constant 0.000000e+00 : f32
      %32 = vector.broadcast %cst_17 : f32 to vector<1x32xf32>
      %c0_18 = arith.constant 0 : index
      %c0_19 = arith.constant 0 : index
      %33 = vector.load %arg17[%c0_18, %c0_19] : memref<1x32xf32, #tpu.memory_space<vmem>>, vector<1x32xf32>
      tpu.vector_store %arg17[%c0_18, %c0_19], %32 {strides = array<i32>} : memref<1x32xf32, #tpu.memory_space<vmem>>, vector<1x32xf32>,
    } else {
    }
    %c0_i32_10 = arith.constant 0 : i32
    %20 = arith.cmpi eq, %arg0, %c0_i32_10 : i32
    %c1_i32_11 = arith.constant 1 : i32
    %21 = arith.cmpi slt, %arg1, %c1_i32_11 : i32
    %22 = arith.andi %20, %21 : i1
    %23 = arith.extui %22 : i1 to i32
    %c0_i32_12 = arith.constant 0 : i32
    %24 = arith.cmpi ne, %23, %c0_i32_12 : i32
    scf.if %24 {
      %c0 = arith.constant 0 : index
      %c0_16 = arith.constant 0 : index
      %30 = vector.load %arg7[%c0, %c0_16] : memref<24x12xf32, #tpu.memory_space<vmem>>, vector<24x12xf32>
      %c0_17 = arith.constant 0 : index
      %c0_18 = arith.constant 0 : index
      %31 = vector.load %arg8[%c0_17, %c0_18] : memref<12x32xf32, #tpu.memory_space<vmem>>, vector<12x32xf32>
      %cst = arith.constant dense<0.000000e+00> : vector<24x32xf32>
      %32 = tpu.matmul %30, %31, %cst {dimension_numbers = #tpu.dot_dimension_numbers<[1], [0], [0], [1], [0, 0, 1, 1], [], []>} : vector<24x12xf32>, vector<12x32xf32>, vector<24x32xf32> -> vector<24x32xf32>
      %c0_19 = arith.constant 0 : index
      %c0_20 = arith.constant 0 : index
      %33 = vector.load %arg9[%c0_19, %c0_20] : memref<1x32xf32, #tpu.memory_space<vmem>>, vector<1x32xf32>
      %34 = vector.broadcast %33 : vector<1x32xf32> to vector<24x32xf32>
      %35 = arith.addf %32, %34 : vector<24x32xf32>
      %cst_21 = arith.constant 0.000000e+00 : f32
      %36 = vector.broadcast %cst_21 : f32 to vector<24x32xf32>
      %37 = arith.maximumf %35, %36 : vector<24x32xf32>
      %38 = tpu.iota {dimensions = array<i32: 0>} : vector<24x1xi32>
      %c24_i32 = arith.constant 24 : i32
      %39 = arith.muli %arg1, %c24_i32 : i32
      %40 = vector.broadcast %39 : i32 to vector<24x1xi32>
      %41 = arith.addi %38, %40 : vector<24x1xi32>
      %c24_i32_22 = arith.constant 24 : i32
      %42 = vector.broadcast %c24_i32_22 : i32 to vector<24x1xi32>
      %43 = arith.cmpi slt, %41, %42 : vector<24x1xi32>
      %cst_23 = arith.constant 0.000000e+00 : f32
      %44 = vector.shape_cast %43 : vector<24x1xi1> to vector<24x1xi1>
      %45 = vector.broadcast %44 : vector<24x1xi1> to vector<24x32xi1>
      %46 = vector.broadcast %cst_23 : f32 to vector<24x32xf32>
      %47 = arith.select %45, %37, %46 : vector<24x32xi1>, vector<24x32xf32>
      %c0_24 = arith.constant 0 : index
      %c0_25 = arith.constant 0 : index
      %48 = vector.load %arg16[%c0_24, %c0_25] : memref<1x32xf32, #tpu.memory_space<vmem>>, vector<1x32xf32>
      %cst_26 = arith.constant dense<0.000000e+00> : vector<32xf32>
      %49 = vector.multi_reduction <add>, %47, %cst_26 [0] : vector<24x32xf32> to vector<32xf32>
      %50 = vector.shape_cast %49 : vector<32xf32> to vector<1x32xf32>
      %51 = arith.addf %48, %50 : vector<1x32xf32>
      %c0_27 = arith.constant 0 : index
      %c0_28 = arith.constant 0 : index
      %52 = vector.load %arg16[%c0_27, %c0_28] : memref<1x32xf32, #tpu.memory_space<vmem>>, vector<1x32xf32>
      tpu.vector_store %arg16[%c0_27, %c0_28], %51 {strides = array<i32>} : memref<1x32xf32, #tpu.memory_space<vmem>>, vector<1x32xf32>,
      %c0_29 = arith.constant 0 : index
      %c0_30 = arith.constant 0 : index
      %53 = vector.load %arg17[%c0_29, %c0_30] : memref<1x32xf32, #tpu.memory_space<vmem>>, vector<1x32xf32>
      %54 = arith.mulf %47, %47 : vector<24x32xf32>
      %cst_31 = arith.constant dense<0.000000e+00> : vector<32xf32>
      %55 = vector.multi_reduction <add>, %54, %cst_31 [0] : vector<24x32xf32> to vector<32xf32>
      %56 = vector.shape_cast %55 : vector<32xf32> to vector<1x32xf32>
      %57 = arith.addf %53, %56 : vector<1x32xf32>
      %c0_32 = arith.constant 0 : index
      %c0_33 = arith.constant 0 : index
      %58 = vector.load %arg17[%c0_32, %c0_33] : memref<1x32xf32, #tpu.memory_space<vmem>>, vector<1x32xf32>
      tpu.vector_store %arg17[%c0_32, %c0_33], %57 {strides = array<i32>} : memref<1x32xf32, #tpu.memory_space<vmem>>, vector<1x32xf32>,
    } else {
    }
    %c1_i32_13 = arith.constant 1 : i32
    %25 = arith.cmpi eq, %arg0, %c1_i32_13 : i32
    %c1_i32_14 = arith.constant 1 : i32
    %26 = arith.cmpi slt, %arg1, %c1_i32_14 : i32
    %27 = arith.andi %25, %26 : i1
    %28 = arith.extui %27 : i1 to i32
    %c0_i32_15 = arith.constant 0 : i32
    %29 = arith.cmpi ne, %28, %c0_i32_15 : i32
    scf.if %29 {
      %c0 = arith.constant 0 : index
      %c0_16 = arith.constant 0 : index
      %30 = vector.load %arg16[%c0, %c0_16] : memref<1x32xf32, #tpu.memory_space<vmem>>, vector<1x32xf32>
      %cst = arith.constant 0.0416666679 : f32
      %31 = vector.broadcast %cst : f32 to vector<1x32xf32>
      %32 = arith.mulf %30, %31 : vector<1x32xf32>
      %c0_17 = arith.constant 0 : index
      %c0_18 = arith.constant 0 : index
      %33 = vector.load %arg17[%c0_17, %c0_18] : memref<1x32xf32, #tpu.memory_space<vmem>>, vector<1x32xf32>
      %cst_19 = arith.constant 0.0416666679 : f32
      %34 = vector.broadcast %cst_19 : f32 to vector<1x32xf32>
      %35 = arith.mulf %33, %34 : vector<1x32xf32>
      %36 = arith.mulf %32, %32 : vector<1x32xf32>
      %37 = arith.subf %35, %36 : vector<1x32xf32>
      %cst_20 = arith.constant 0.000000e+00 : f32
      %38 = vector.broadcast %cst_20 : f32 to vector<1x32xf32>
      %39 = arith.maximumf %37, %38 : vector<1x32xf32>
      %c0_21 = arith.constant 0 : index
      %c0_22 = arith.constant 0 : index
      %40 = vector.load %arg10[%c0_21, %c0_22] : memref<1x32xf32, #tpu.memory_space<vmem>>, vector<1x32xf32>
      %cst_23 = arith.constant 9.99999974E-6 : f32
      %41 = vector.broadcast %cst_23 : f32 to vector<1x32xf32>
      %42 = arith.addf %39, %41 : vector<1x32xf32>
      %43 = math.rsqrt %42 : vector<1x32xf32>
      %44 = arith.mulf %40, %43 : vector<1x32xf32>
      %c0_24 = arith.constant 0 : index
      %c0_25 = arith.constant 0 : index
      %45 = vector.load %arg11[%c0_24, %c0_25] : memref<1x32xf32, #tpu.memory_space<vmem>>, vector<1x32xf32>
      %46 = arith.mulf %32, %44 : vector<1x32xf32>
      %47 = arith.subf %45, %46 : vector<1x32xf32>
      %c0_26 = arith.constant 0 : index
      %c0_27 = arith.constant 0 : index
      %48 = vector.load %arg7[%c0_26, %c0_27] : memref<24x12xf32, #tpu.memory_space<vmem>>, vector<24x12xf32>
      %c0_28 = arith.constant 0 : index
      %c0_29 = arith.constant 0 : index
      %49 = vector.load %arg8[%c0_28, %c0_29] : memref<12x32xf32, #tpu.memory_space<vmem>>, vector<12x32xf32>
      %cst_30 = arith.constant dense<0.000000e+00> : vector<24x32xf32>
      %50 = tpu.matmul %48, %49, %cst_30 {dimension_numbers = #tpu.dot_dimension_numbers<[1], [0], [0], [1], [0, 0, 1, 1], [], []>} : vector<24x12xf32>, vector<12x32xf32>, vector<24x32xf32> -> vector<24x32xf32>
      %c0_31 = arith.constant 0 : index
      %c0_32 = arith.constant 0 : index
      %51 = vector.load %arg9[%c0_31, %c0_32] : memref<1x32xf32, #tpu.memory_space<vmem>>, vector<1x32xf32>
      %52 = vector.broadcast %51 : vector<1x32xf32> to vector<24x32xf32>
      %53 = arith.addf %50, %52 : vector<24x32xf32>
      %cst_33 = arith.constant 0.000000e+00 : f32
      %54 = vector.broadcast %cst_33 : f32 to vector<24x32xf32>
      %55 = arith.maximumf %53, %54 : vector<24x32xf32>
      %56 = vector.broadcast %44 : vector<1x32xf32> to vector<24x32xf32>
      %57 = arith.mulf %55, %56 : vector<24x32xf32>
      %58 = vector.broadcast %47 : vector<1x32xf32> to vector<24x32xf32>
      %59 = arith.addf %57, %58 : vector<24x32xf32>
      %c0_34 = arith.constant 0 : index
      %c0_35 = arith.constant 0 : index
      %60 = vector.load %arg13[%c0_34, %c0_35] : memref<24x32xf32, #tpu.memory_space<vmem>>, vector<24x32xf32>
      tpu.vector_store %arg13[%c0_34, %c0_35], %59 {strides = array<i32>} : memref<24x32xf32, #tpu.memory_space<vmem>>, vector<24x32xf32>,
    } else {
    }
    return
  }
  func.func @transform_0(%arg0: i32, %arg1: i32) -> (i32, i32) {
    %c0_i32 = arith.constant 0 : i32
    %0 = arith.minsi %arg1, %c0_i32 : i32
    %c0_i32_0 = arith.constant 0 : i32
    %c0_i32_1 = arith.constant 0 : i32
    return %0, %c0_i32_0 : i32, i32
  }
  func.func @transform_1(%arg0: i32, %arg1: i32) -> (i32, i32) {
    %c0_i32 = arith.constant 0 : i32
    %c0_i32_0 = arith.constant 0 : i32
    %c0_i32_1 = arith.constant 0 : i32
    return %c0_i32, %c0_i32_0 : i32, i32
  }
  func.func @transform_2(%arg0: i32, %arg1: i32) -> (i32, i32) {
    %c0_i32 = arith.constant 0 : i32
    %c0_i32_0 = arith.constant 0 : i32
    %c0_i32_1 = arith.constant 0 : i32
    return %c0_i32, %c0_i32_0 : i32, i32
  }
  func.func @transform_3(%arg0: i32, %arg1: i32) -> (i32, i32) {
    %c0_i32 = arith.constant 0 : i32
    %c0_i32_0 = arith.constant 0 : i32
    %c0_i32_1 = arith.constant 0 : i32
    return %c0_i32, %c0_i32_0 : i32, i32
  }
  func.func @transform_4(%arg0: i32, %arg1: i32) -> (i32, i32) {
    %c0_i32 = arith.constant 0 : i32
    %c0_i32_0 = arith.constant 0 : i32
    %c0_i32_1 = arith.constant 0 : i32
    return %c0_i32, %c0_i32_0 : i32, i32
  }
  func.func @transform_5(%arg0: i32, %arg1: i32) -> (i32, i32) {
    %c0_i32 = arith.constant 0 : i32
    %0 = arith.minsi %arg1, %c0_i32 : i32
    %c0_i32_0 = arith.constant 0 : i32
    %c0_i32_1 = arith.constant 0 : i32
    return %0, %c0_i32_0 : i32, i32
  }
  func.func @transform_6(%arg0: i32, %arg1: i32) -> (i32, i32) {
    %c0_i32 = arith.constant 0 : i32
    %c0_i32_0 = arith.constant 0 : i32
    %c0_i32_1 = arith.constant 0 : i32
    return %c0_i32, %c0_i32_0 : i32, i32
  }
  func.func @transform_7(%arg0: i32, %arg1: i32) -> (i32, i32) {
    %c0_i32 = arith.constant 0 : i32
    %c0_i32_0 = arith.constant 0 : i32
    %c0_i32_1 = arith.constant 0 : i32
    return %c0_i32, %c0_i32_0 : i32, i32
  }
  func.func @transform_8(%arg0: i32, %arg1: i32) -> (i32, i32) {
    %c0_i32 = arith.constant 0 : i32
    %c0_i32_0 = arith.constant 0 : i32
    %c0_i32_1 = arith.constant 0 : i32
    return %c0_i32, %c0_i32_0 : i32, i32
  }
  func.func @transform_9(%arg0: i32, %arg1: i32) -> (i32, i32) {
    %c0_i32 = arith.constant 0 : i32
    %c0_i32_0 = arith.constant 0 : i32
    %c0_i32_1 = arith.constant 0 : i32
    return %c0_i32, %c0_i32_0 : i32, i32
  }
  func.func @transform_10(%arg0: i32, %arg1: i32) -> (i32, i32) {
    %c0_i32 = arith.constant 0 : i32
    %0 = arith.cmpi eq, %arg0, %c0_i32 : i32
    %c0_i32_0 = arith.constant 0 : i32
    %1 = arith.minsi %arg1, %c0_i32_0 : i32
    %c0_i32_1 = arith.constant 0 : i32
    %2 = arith.select %0, %c0_i32_1, %1 : i32
    %c0_i32_2 = arith.constant 0 : i32
    %c0_i32_3 = arith.constant 0 : i32
    return %2, %c0_i32_2 : i32, i32
  }
  func.func @transform_11(%arg0: i32, %arg1: i32) -> (i32, i32) {
    %c0_i32 = arith.constant 0 : i32
    %0 = arith.cmpi eq, %arg0, %c0_i32 : i32
    %c0_i32_0 = arith.constant 0 : i32
    %1 = arith.minsi %arg1, %c0_i32_0 : i32
    %c0_i32_1 = arith.constant 0 : i32
    %2 = arith.select %0, %c0_i32_1, %1 : i32
    %c0_i32_2 = arith.constant 0 : i32
    %c0_i32_3 = arith.constant 0 : i32
    return %2, %c0_i32_2 : i32, i32
  }
}

</mosaic_0001>

<llo_original>
// kernel: embedding_forward.1
$region0: #{embedding_forward.1}
  #allocation0 [shape = 'u32[]', space=smem, size = 0x4, offset = 0x4, fixed_abs, tag = 'smem constant byte address 0x4 - core index']
  #allocation1 [shape = 'u32[144,128]{1,0:T(1,128)}', space=vmem, size = 0x12000, scoped, tag = 'internal scratch']
  #allocation2 [shape = 'f32[1,32]{1,0:T(1,128)}', space=vmem, size = 0x200, scoped, tag = 'scratch operand']
  #allocation3 [shape = 'f32[1,32]{1,0:T(1,128)}', space=vmem, size = 0x200, scoped, tag = 'scratch operand']
  #allocation4 [shape = 'f32[1,32]{1,0:T(1,128)}', space=vmem, size = 0x200, scoped, tag = 'scratch operand']
  #allocation5 [shape = 'f32[1,32]{1,0:T(1,128)}', space=vmem, size = 0x200, scoped, tag = 'scratch operand']
  %s0 = inlined_call_operand.vmem [shape: f32[16,8], index: 0, kind: input, shape index: {}]
  %s1 = inlined_call_operand.vmem [shape: f32[8,32], index: 1, kind: input, shape index: {}]
  %s2 = inlined_call_operand.vmem [shape: f32[1,32], index: 2, kind: input, shape index: {}]
  %s3 = inlined_call_operand.vmem [shape: f32[1,32], index: 3, kind: input, shape index: {}]
  %s4 = inlined_call_operand.vmem [shape: f32[1,32], index: 4, kind: input, shape index: {}]
  %s5 = inlined_call_operand.vmem [shape: f32[24,12], index: 5, kind: input, shape index: {}]
  %s6 = inlined_call_operand.vmem [shape: f32[12,32], index: 6, kind: input, shape index: {}]
  %s7 = inlined_call_operand.vmem [shape: f32[1,32], index: 7, kind: input, shape index: {}]
  %s8 = inlined_call_operand.vmem [shape: f32[1,32], index: 8, kind: input, shape index: {}]
  %s9 = inlined_call_operand.vmem [shape: f32[1,32], index: 9, kind: input, shape index: {}]
  %s10 = inlined_call_operand.hbm [shape: f32[16,32], index: 10, kind: output, shape index: {0}]
  %s11 = inlined_call_operand.hbm [shape: f32[24,32], index: 11, kind: output, shape index: {1}]
  %12 = xla_tuple %s10, %s11
  %s13 = sld [smem:[#allocation0]]
  $region105: #{embedding_forward.1} parent=0
    _
  %s15 = ssub.s32 1, %s13
  %s16 = scalar_select 0, %s15, %s13
  $region1: #{embedding_forward.1} parent=0
    #allocation6 [shape = 'u8[24576]{0}', space=vmem, size = 0x6000, scoped, tag = 'output window, operand 0']
    #allocation7 [shape = 's32[2]{0}', space=sflag, size = 0x8, scoped, tag = 'scoped memory for embedding_forward.1']
    #allocation8 [shape = 'u8[24576]{0}', space=vmem, size = 0x6000, scoped, tag = 'output window, operand 1']
    #allocation9 [shape = 's32[2]{0}', space=sflag, size = 0x8, scoped, tag = 'scoped memory for embedding_forward.1']
    %17 = vsyncpa [#allocation7], 0
    %s18 = scalar_lea.sflag [#allocation7], 1
    %19 = vsyncpa %s18, 0
    %20 = vsyncpa [#allocation9], 0
    %s21 = scalar_lea.sflag [#allocation9], 1
    %22 = vsyncpa %s21, 0
    loop: start=0, step=1, limit=4
    $region2: #{embedding_forward.1} parent=1 // loop_pre_header
      _
    $region3: #{embedding_forward.1} parent=1 // loop_header
      %s24 = sphi 0, %s28
      %p25 = scmp.ge.s32.totalorder %s24, 4
      %s31 = sphi 0, %s43
      %s32 = sphi 0, %s39
      %s33 = sphi 0, %s31
      %s34 = sphi 0, %s32
      %s35 = sphi 0, %s33
      %s36 = sphi 0, %s34
      %s50 = sphi 0, %s52
      %s53 = sphi 0, %s50
      %s54 = sphi 0, %s53
      %s70 = sphi 0, %s54
      %s74 = sphi 0, %s74
      %s76 = sphi 0, %s74
      %s77 = sphi 0, %s76
      %s91 = sphi 0, %s77
      %s95 = sphi 0, %s95
      %s97 = sphi 0, %s95
      %s98 = sphi 0, %s97
      %s112 = sphi 0, %s98
      %s116 = sphi 0, %s116
      %s118 = sphi 0, %s116
      %s119 = sphi 0, %s118
      %s133 = sphi 0, %s119
      %s137 = sphi 0, %s137
      %s139 = sphi 0, %s137
      %s140 = sphi 0, %s139
      %s154 = sphi 0, %s140
      %s164 = sphi 0, %s166
      %s167 = sphi 0, %s164
      %s168 = sphi 0, %s167
      %s184 = sphi 0, %s168
      %s188 = sphi 0, %s188
      %s190 = sphi 0, %s188
      %s191 = sphi 0, %s190
      %s205 = sphi 0, %s191
      %s209 = sphi 0, %s209
      %s211 = sphi 0, %s209
      %s212 = sphi 0, %s211
      %s226 = sphi 0, %s212
      %s230 = sphi 0, %s230
      %s232 = sphi 0, %s230
      %s233 = sphi 0, %s232
      %s247 = sphi 0, %s233
      %s251 = sphi 0, %s251
      %s253 = sphi 0, %s251
      %s254 = sphi 0, %s253
      %s268 = sphi 0, %s254
      %s282 = sphi 0, %s284
      %s285 = sphi 0, %s282
      %s286 = sphi 0, %s285
      %s302 = sphi 0, %s286
      %s316 = sphi 0, %s318
      %s319 = sphi 0, %s316
      %s320 = sphi 0, %s319
      %s336 = sphi 0, %s320
    $region4: #{embedding_forward.1} parent=1 // loop_header_branch
      %27 = sbr.rel (%p25) target = $region8
    $region5: #{embedding_forward.1} parent=1 // loop_body
      %s29 = ssub.s32 %s24, 1
      %s30 = ssub.s32 %s24, 2
      %s37 = sadd.s32 1, %s32
      %p38 = scmp.ge.s32.totalorder %s37, 1
      %s39 = scalar_select %p38, 0, %s37
      %s40 = sadd.s32 1, %s31
      %s41 = scalar_select %p38, %s40, %s31
      %p42 = scmp.ge.s32.totalorder %s41, 2
      %s43 = scalar_select %p42, 0, %s41
      %p44 = scmp.lt.s32.totalorder %s32, 0
      %s45 = scalar_select %p44, %s32, 0
      %p46 = scmp.lt.s32.totalorder %s39, 0
      %s47 = scalar_select %p46, %s39, 0
      %s48 = ssub.s32 %s45, %s47
      %p49 = scmp.eq.s32.totalorder %s48, 0
      %s51 = sadd.s32 %s50, 1
      %s52 = scalar_select %p49, %s50, %s51
      %p55 = pneg %p49
      %p56 = scmp.eq.s32.totalorder %s24, 1
      %p57 = por %p55, %p56
      %p58 = scmp.ne.s32.totalorder %s50, %s53
      %p59 = scmp.eq.s32.totalorder %s24, 0
      %p60 = por %p58, %p59
      %p61 = scmp.ne.s32.totalorder %s50, %s53
      %p62 = scmp.eq.s32.totalorder %s29, 1
      %p63 = por %p61, %p62
      %p64 = scmp.ne.s32.totalorder %s53, %s54
      %p65 = scmp.eq.s32.totalorder %s29, 0
      %p66 = por %p64, %p65
      %p67 = scmp.ne.s32.totalorder %s53, %s54
      %p68 = scmp.eq.s32.totalorder %s30, 1
      %p69 = por %p67, %p68
      %p71 = scmp.ne.s32.totalorder %s54, %s70
      %p72 = scmp.eq.s32.totalorder %s30, 0
      %p73 = por %p71, %p72
      %s75 = sadd.s32 %s74, 1
      %p78 = scmp.eq.s32.totalorder %s24, 1
      %p79 = scmp.ne.s32.totalorder %s74, %s76
      %p80 = scmp.eq.s32.totalorder %s24, 0
      %p81 = por %p79, %p80
      %p82 = scmp.ne.s32.totalorder %s74, %s76
      %p83 = scmp.eq.s32.totalorder %s29, 1
      %p84 = por %p82, %p83
      %p85 = scmp.ne.s32.totalorder %s76, %s77
      %p86 = scmp.eq.s32.totalorder %s29, 0
      %p87 = por %p85, %p86
      %p88 = scmp.ne.s32.totalorder %s76, %s77
      %p89 = scmp.eq.s32.totalorder %s30, 1
      %p90 = por %p88, %p89
      %p92 = scmp.ne.s32.totalorder %s77, %s91
      %p93 = scmp.eq.s32.totalorder %s30, 0
      %p94 = por %p92, %p93
      %s96 = sadd.s32 %s95, 1
      %p99 = scmp.eq.s32.totalorder %s24, 1
      %p100 = scmp.ne.s32.totalorder %s95, %s97
      %p101 = scmp.eq.s32.totalorder %s24, 0
      %p102 = por %p100, %p101
      %p103 = scmp.ne.s32.totalorder %s95, %s97
      %p104 = scmp.eq.s32.totalorder %s29, 1
      %p105 = por %p103, %p104
      %p106 = scmp.ne.s32.totalorder %s97, %s98
      %p107 = scmp.eq.s32.totalorder %s29, 0
      %p108 = por %p106, %p107
      %p109 = scmp.ne.s32.totalorder %s97, %s98
      %p110 = scmp.eq.s32.totalorder %s30, 1
      %p111 = por %p109, %p110
      %p113 = scmp.ne.s32.totalorder %s98, %s112
      %p114 = scmp.eq.s32.totalorder %s30, 0
      %p115 = por %p113, %p114
      %s117 = sadd.s32 %s116, 1
      %p120 = scmp.eq.s32.totalorder %s24, 1
      %p121 = scmp.ne.s32.totalorder %s116, %s118
      %p122 = scmp.eq.s32.totalorder %s24, 0
      %p123 = por %p121, %p122
      %p124 = scmp.ne.s32.totalorder %s116, %s118
      %p125 = scmp.eq.s32.totalorder %s29, 1
      %p126 = por %p124, %p125
      %p127 = scmp.ne.s32.totalorder %s118, %s119
      %p128 = scmp.eq.s32.totalorder %s29, 0
      %p129 = por %p127, %p128
      %p130 = scmp.ne.s32.totalorder %s118, %s119
      %p131 = scmp.eq.s32.totalorder %s30, 1
      %p132 = por %p130, %p131
      %p134 = scmp.ne.s32.totalorder %s119, %s133
      %p135 = scmp.eq.s32.totalorder %s30, 0
      %p136 = por %p134, %p135
      %s138 = sadd.s32 %s137, 1
      %p141 = scmp.eq.s32.totalorder %s24, 1
      %p142 = scmp.ne.s32.totalorder %s137, %s139
      %p143 = scmp.eq.s32.totalorder %s24, 0
      %p144 = por %p142, %p143
      %p145 = scmp.ne.s32.totalorder %s137, %s139
      %p146 = scmp.eq.s32.totalorder %s29, 1
      %p147 = por %p145, %p146
      %p148 = scmp.ne.s32.totalorder %s139, %s140
      %p149 = scmp.eq.s32.totalorder %s29, 0
      %p150 = por %p148, %p149
      %p151 = scmp.ne.s32.totalorder %s139, %s140
      %p152 = scmp.eq.s32.totalorder %s30, 1
      %p153 = por %p151, %p152
      %p155 = scmp.ne.s32.totalorder %s140, %s154
      %p156 = scmp.eq.s32.totalorder %s30, 0
      %p157 = por %p155, %p156
      %p158 = scmp.lt.s32.totalorder %s32, 0
      %s159 = scalar_select %p158, %s32, 0
      %p160 = scmp.lt.s32.totalorder %s39, 0
      %s161 = scalar_select %p160, %s39, 0
      %s162 = ssub.s32 %s159, %s161
      %p163 = scmp.eq.s32.totalorder %s162, 0
      %s165 = sadd.s32 %s164, 1
      %s166 = scalar_select %p163, %s164, %s165
      %p169 = pneg %p163
      %p170 = scmp.eq.s32.totalorder %s24, 1
      %p171 = por %p169, %p170
      %p172 = scmp.ne.s32.totalorder %s164, %s167
      %p173 = scmp.eq.s32.totalorder %s24, 0
      %p174 = por %p172, %p173
      %p175 = scmp.ne.s32.totalorder %s164, %s167
      %p176 = scmp.eq.s32.totalorder %s29, 1
      %p177 = por %p175, %p176
      %p178 = scmp.ne.s32.totalorder %s167, %s168
      %p179 = scmp.eq.s32.totalorder %s29, 0
      %p180 = por %p178, %p179
      %p181 = scmp.ne.s32.totalorder %s167, %s168
      %p182 = scmp.eq.s32.totalorder %s30, 1
      %p183 = por %p181, %p182
      %p185 = scmp.ne.s32.totalorder %s168, %s184
      %p186 = scmp.eq.s32.totalorder %s30, 0
      %p187 = por %p185, %p186
      %s189 = sadd.s32 %s188, 1
      %p192 = scmp.eq.s32.totalorder %s24, 1
      %p193 = scmp.ne.s32.totalorder %s188, %s190
      %p194 = scmp.eq.s32.totalorder %s24, 0
      %p195 = por %p193, %p194
      %p196 = scmp.ne.s32.totalorder %s188, %s190
      %p197 = scmp.eq.s32.totalorder %s29, 1
      %p198 = por %p196, %p197
      %p199 = scmp.ne.s32.totalorder %s190, %s191
      %p200 = scmp.eq.s32.totalorder %s29, 0
      %p201 = por %p199, %p200
      %p202 = scmp.ne.s32.totalorder %s190, %s191
      %p203 = scmp.eq.s32.totalorder %s30, 1
      %p204 = por %p202, %p203
      %p206 = scmp.ne.s32.totalorder %s191, %s205
      %p207 = scmp.eq.s32.totalorder %s30, 0
      %p208 = por %p206, %p207
      %s210 = sadd.s32 %s209, 1
      %p213 = scmp.eq.s32.totalorder %s24, 1
      %p214 = scmp.ne.s32.totalorder %s209, %s211
      %p215 = scmp.eq.s32.totalorder %s24, 0
      %p216 = por %p214, %p215
      %p217 = scmp.ne.s32.totalorder %s209, %s211
      %p218 = scmp.eq.s32.totalorder %s29, 1
      %p219 = por %p217, %p218
      %p220 = scmp.ne.s32.totalorder %s211, %s212
      %p221 = scmp.eq.s32.totalorder %s29, 0
      %p222 = por %p220, %p221
      %p223 = scmp.ne.s32.totalorder %s211, %s212
      %p224 = scmp.eq.s32.totalorder %s30, 1
      %p225 = por %p223, %p224
      %p227 = scmp.ne.s32.totalorder %s212, %s226
      %p228 = scmp.eq.s32.totalorder %s30, 0
      %p229 = por %p227, %p228
      %s231 = sadd.s32 %s230, 1
      %p234 = scmp.eq.s32.totalorder %s24, 1
      %p235 = scmp.ne.s32.totalorder %s230, %s232
      %p236 = scmp.eq.s32.totalorder %s24, 0
      %p237 = por %p235, %p236
      %p238 = scmp.ne.s32.totalorder %s230, %s232
      %p239 = scmp.eq.s32.totalorder %s29, 1
      %p240 = por %p238, %p239
      %p241 = scmp.ne.s32.totalorder %s232, %s233
      %p242 = scmp.eq.s32.totalorder %s29, 0
      %p243 = por %p241, %p242
      %p244 = scmp.ne.s32.totalorder %s232, %s233
      %p245 = scmp.eq.s32.totalorder %s30, 1
      %p246 = por %p244, %p245
      %p248 = scmp.ne.s32.totalorder %s233, %s247
      %p249 = scmp.eq.s32.totalorder %s30, 0
      %p250 = por %p248, %p249
      %s252 = sadd.s32 %s251, 1
      %p255 = scmp.eq.s32.totalorder %s24, 1
      %p256 = scmp.ne.s32.totalorder %s251, %s253
      %p257 = scmp.eq.s32.totalorder %s24, 0
      %p258 = por %p256, %p257
      %p259 = scmp.ne.s32.totalorder %s251, %s253
      %p260 = scmp.eq.s32.totalorder %s29, 1
      %p261 = por %p259, %p260
      %p262 = scmp.ne.s32.totalorder %s253, %s254
      %p263 = scmp.eq.s32.totalorder %s29, 0
      %p264 = por %p262, %p263
      %p265 = scmp.ne.s32.totalorder %s253, %s254
      %p266 = scmp.eq.s32.totalorder %s30, 1
      %p267 = por %p265, %p266
      %p269 = scmp.ne.s32.totalorder %s254, %s268
      %p270 = scmp.eq.s32.totalorder %s30, 0
      %p271 = por %p269, %p270
      %p272 = scmp.eq.s32.totalorder %s31, 0
      %p273 = scmp.lt.s32.totalorder %s32, 0
      %s274 = scalar_select %p273, %s32, 0
      %s275 = scalar_select %p272, 0, %s274
      %p276 = scmp.eq.s32.totalorder %s43, 0
      %p277 = scmp.lt.s32.totalorder %s39, 0
      %s278 = scalar_select %p277, %s39, 0
      %s279 = scalar_select %p276, 0, %s278
      %s280 = ssub.s32 %s275, %s279
      %p281 = scmp.eq.s32.totalorder %s280, 0
      %s283 = sadd.s32 %s282, 1
      %s284 = scalar_select %p281, %s282, %s283
      %p287 = pneg %p281
      %p288 = scmp.eq.s32.totalorder %s24, 1
      %p289 = por %p287, %p288
      %p290 = scmp.ne.s32.totalorder %s282, %s285
      %p291 = scmp.eq.s32.totalorder %s24, 0
      %p292 = por %p290, %p291
      %p293 = scmp.ne.s32.totalorder %s282, %s285
      %p294 = scmp.eq.s32.totalorder %s29, 1
      %p295 = por %p293, %p294
      %p296 = scmp.ne.s32.totalorder %s285, %s286
      %p297 = scmp.eq.s32.totalorder %s29, 0
      %p298 = por %p296, %p297
      %p299 = scmp.ne.s32.totalorder %s285, %s286
      %p300 = scmp.eq.s32.totalorder %s30, 1
      %p301 = por %p299, %p300
      %p303 = scmp.ne.s32.totalorder %s286, %s302
      %p304 = scmp.eq.s32.totalorder %s30, 0
      %p305 = por %p303, %p304
      %p306 = scmp.eq.s32.totalorder %s31, 0
      %p307 = scmp.lt.s32.totalorder %s32, 0
      %s308 = scalar_select %p307, %s32, 0
      %s309 = scalar_select %p306, 0, %s308
      %p310 = scmp.eq.s32.totalorder %s43, 0
      %p311 = scmp.lt.s32.totalorder %s39, 0
      %s312 = scalar_select %p311, %s39, 0
      %s313 = scalar_select %p310, 0, %s312
      %s314 = ssub.s32 %s309, %s313
      %p315 = scmp.eq.s32.totalorder %s314, 0
      %s317 = sadd.s32 %s316, 1
      %s318 = scalar_select %p315, %s316, %s317
      %p321 = pneg %p315
      %p322 = scmp.eq.s32.totalorder %s24, 1
      %p323 = por %p321, %p322
      %p324 = scmp.ne.s32.totalorder %s316, %s319
      %p325 = scmp.eq.s32.totalorder %s24, 0
      %p326 = por %p324, %p325
      %p327 = scmp.ne.s32.totalorder %s316, %s319
      %p328 = scmp.eq.s32.totalorder %s29, 1
      %p329 = por %p327, %p328
      %p330 = scmp.ne.s32.totalorder %s319, %s320
      %p331 = scmp.eq.s32.totalorder %s29, 0
      %p332 = por %p330, %p331
      %p333 = scmp.ne.s32.totalorder %s319, %s320
      %p334 = scmp.eq.s32.totalorder %s30, 1
      %p335 = por %p333, %p334
      %p337 = scmp.ne.s32.totalorder %s320, %s336
      %p338 = scmp.eq.s32.totalorder %s30, 0
      %p339 = por %p337, %p338
      %p340 = scmp.le.s32.totalorder 1, %s24
      %p341 = scmp.lt.s32.totalorder %s24, 3
      %p342 = pnand %p340, %p341
      %p343 = pneg %p342
      // Predicated region
      $region9: #{embedding_forward.1} parent=5 // pred_check
        _
      $region10: #{embedding_forward.1} parent=5 // pred_check_branch
        %345 = sbr.rel (%p342) target = $region12
      $region11: #{embedding_forward.1} parent=5 // pred_region
        %s346 = ssub.s32 %s24, 1
        // Predicated region
        $region13: #{embedding_forward.1} parent=11 // pred_check
          %p347 = pneg %p66
        $region14: #{embedding_forward.1} parent=11 // pred_check_branch
          %349 = sbr.rel (%p347) target = $region16
        $region15: #{embedding_forward.1} parent=11 // pred_region
          %p350 = scmp.lt.s32.totalorder %s34, 0
          %s351 = scalar_select %p350, %s34, 0
          %s352 = smul.u32 3, %s351
          %s353 = ssub.s32 2, %s352
          %s354 = smul.u32 128, %s353
          %p355 = scmp.lt.s32.totalorder %s352, 1
          %s356 = scalar_select %p355, %s352, 1
          %s357 = smul.addr %s356, 8
          %s358 = scalar_lea.vmem %s0, %s357
          %p359 = scmp.lt.s32.totalorder %s34, 0
          %s360 = scalar_select %p359, %s34, 0
          %s361 = smul.u32 3, %s360
          %s362 = ssub.s32 2, %s361
          %s363 = smul.u32 128, %s362
        $region16: #{embedding_forward.1} parent=11 // pred_fallthru
          _
        // Predicated region
        $region17: #{embedding_forward.1} parent=11 // pred_check
          %p364 = pneg %p87
        $region18: #{embedding_forward.1} parent=11 // pred_check_branch
          %366 = sbr.rel (%p364) target = $region20
        $region19: #{embedding_forward.1} parent=11 // pred_region
          _
        $region20: #{embedding_forward.1} parent=11 // pred_fallthru
          _
        // Predicated region
        $region21: #{embedding_forward.1} parent=11 // pred_check
          %p367 = pneg %p108
        $region22: #{embedding_forward.1} parent=11 // pred_check_branch
          %369 = sbr.rel (%p367) target = $region24
        $region23: #{embedding_forward.1} parent=11 // pred_region
          _
        $region24: #{embedding_forward.1} parent=11 // pred_fallthru
          _
        // Predicated region
        $region25: #{embedding_forward.1} parent=11 // pred_check
          %p370 = pneg %p129
        $region26: #{embedding_forward.1} parent=11 // pred_check_branch
          %372 = sbr.rel (%p370) target = $region28
        $region27: #{embedding_forward.1} parent=11 // pred_region
          _
        $region28: #{embedding_forward.1} parent=11 // pred_fallthru
          _
        // Predicated region
        $region29: #{embedding_forward.1} parent=11 // pred_check
          %p373 = pneg %p150
        $region30: #{embedding_forward.1} parent=11 // pred_check_branch
          %375 = sbr.rel (%p373) target = $region32
        $region31: #{embedding_forward.1} parent=11 // pred_region
          _
        $region32: #{embedding_forward.1} parent=11 // pred_fallthru
          _
        // Predicated region
        $region33: #{embedding_forward.1} parent=11 // pred_check
          %p376 = pneg %p180
        $region34: #{embedding_forward.1} parent=11 // pred_check_branch
          %378 = sbr.rel (%p376) target = $region36
        $region35: #{embedding_forward.1} parent=11 // pred_region
          %p379 = scmp.lt.s32.totalorder %s34, 0
          %s380 = scalar_select %p379, %s34, 0
          %s381 = smul.u32 3, %s380
          %p382 = scmp.lt.s32.totalorder %s381, 2
          %s383 = scalar_select %p382, %s381, 2
          %s384 = smul.addr %s383, 8
          %s385 = scalar_lea.vmem %s5, %s384
          %p386 = scmp.lt.s32.totalorder %s34, 0
          %s387 = scalar_select %p386, %s34, 0
          %s388 = smul.u32 3, %s387
        $region36: #{embedding_forward.1} parent=11 // pred_fallthru
          _
        // Predicated region
        $region37: #{embedding_forward.1} parent=11 // pred_check
          %p389 = pneg %p201
        $region38: #{embedding_forward.1} parent=11 // pred_check_branch
          %391 = sbr.rel (%p389) target = $region40
        $region39: #{embedding_forward.1} parent=11 // pred_region
          _
        $region40: #{embedding_forward.1} parent=11 // pred_fallthru
          _
        // Predicated region
        $region41: #{embedding_forward.1} parent=11 // pred_check
          %p392 = pneg %p222
        $region42: #{embedding_forward.1} parent=11 // pred_check_branch
          %394 = sbr.rel (%p392) target = $region44
        $region43: #{embedding_forward.1} parent=11 // pred_region
          _
        $region44: #{embedding_forward.1} parent=11 // pred_fallthru
          _
        // Predicated region
        $region45: #{embedding_forward.1} parent=11 // pred_check
          %p395 = pneg %p243
        $region46: #{embedding_forward.1} parent=11 // pred_check_branch
          %397 = sbr.rel (%p395) target = $region48
        $region47: #{embedding_forward.1} parent=11 // pred_region
          _
        $region48: #{embedding_forward.1} parent=11 // pred_fallthru
          _
        // Predicated region
        $region49: #{embedding_forward.1} parent=11 // pred_check
          %p398 = pneg %p264
        $region50: #{embedding_forward.1} parent=11 // pred_check_branch
          %400 = sbr.rel (%p398) target = $region52
        $region51: #{embedding_forward.1} parent=11 // pred_region
          _
        $region52: #{embedding_forward.1} parent=11 // pred_fallthru
          _
      $region12: #{embedding_forward.1} parent=5 // pred_fallthru
        _
      %p401 = scmp.lt.s32.totalorder %s24, 2
      // Predicated region
      $region53: #{embedding_forward.1} parent=5 // pred_check
        %p402 = pneg %p401
      $region54: #{embedding_forward.1} parent=5 // pred_check_branch
        %404 = sbr.rel (%p402) target = $region56
      $region55: #{embedding_forward.1} parent=5 // pred_region
        _
      $region56: #{embedding_forward.1} parent=5 // pred_fallthru
        _
      %p405 = scmp.le.s32.totalorder 1, %s24
      %p406 = scmp.lt.s32.totalorder %s24, 3
      %p407 = pnand %p405, %p406
      %p408 = pneg %p407
      // Predicated region
      $region57: #{embedding_forward.1} parent=5 // pred_check
        _
      $region58: #{embedding_forward.1} parent=5 // pred_check_branch
        %410 = sbr.rel (%p407) target = $region60
      $region59: #{embedding_forward.1} parent=5 // pred_region
        %s411 = ssub.s32 %s24, 1
        %p412 = scmp.lt.s32.totalorder %s34, 0
        %s413 = scalar_select %p412, %s34, 0
        %s414 = smul.u32 3, %s413
        %s415 = ssub.s32 2, %s414
        %s416 = smul.u32 128, %s415
        %p417 = scmp.lt.s32.totalorder %s414, 1
        %s418 = scalar_select %p417, %s414, 1
        %s419 = smul.addr %s418, 8
        %s420 = scalar_lea.vmem %s0, %s419
        %p421 = pneg %p66
        %p422 = pneg %p63
        %p423 = pneg %p87
        %p424 = pneg %p84
        %p425 = pneg %p108
        %p426 = pneg %p105
        %p427 = pneg %p129
        %p428 = pneg %p126
        %p429 = pneg %p150
        %p430 = pneg %p147
        %p431 = scmp.lt.s32.totalorder %s34, 0
        %s432 = scalar_select %p431, %s34, 0
        %s433 = smul.u32 3, %s432
        %p434 = scmp.lt.s32.totalorder %s433, 2
        %s435 = scalar_select %p434, %s433, 2
        %s436 = smul.addr %s435, 8
        %s437 = scalar_lea.vmem %s5, %s436
        %p438 = pneg %p180
        %p439 = pneg %p177
        %p440 = pneg %p201
        %p441 = pneg %p198
        %p442 = pneg %p222
        %p443 = pneg %p219
        %p444 = pneg %p243
        %p445 = pneg %p240
        %p446 = pneg %p264
        %p447 = pneg %p261
        %p448 = pneg %p298
        %p449 = pneg %p295
        %s450 = sand.u32 %s285, 1
        %s451 = scalar_lea.sflag [#allocation7], %s450
        %s452 = sand.u32 %s285, 1
        %s453 = smul.addr %s452, 24
        %s454 = scalar_lea.vmem [#allocation6], %s453
        %p455 = pneg %p332
        %p456 = pneg %p329
        %s457 = sand.u32 %s319, 1
        %s458 = scalar_lea.sflag [#allocation9], %s457
        %s459 = sand.u32 %s319, 1
        %s460 = smul.addr %s459, 24
        %s461 = scalar_lea.vmem [#allocation8], %s460
        %p462 = scmp.lt.s32.totalorder %s34, 0
        %s463 = scalar_select %p462, %s34, 0
        %s464 = smul.u32 3, %s463
        %s465 = ssub.s32 2, %s464
        %s466 = smul.u32 128, %s465
        %p467 = scmp.lt.s32.totalorder %s464, 1
        %s468 = scalar_select %p467, %s464, 1
        %s469 = smul.addr %s468, 8
        %s470 = scalar_lea.vmem %s0, %s469
        %p471 = scmp.lt.s32.totalorder %s34, 0
        %s472 = scalar_select %p471, %s34, 0
        %s473 = smul.u32 3, %s472
        %s474 = ssub.s32 2, %s473
        %s475 = smul.u32 128, %s474
        %p476 = scmp.lt.s32.totalorder %s34, 0
        %s477 = scalar_select %p476, %s34, 0
        %s478 = smul.u32 3, %s477
        %p479 = scmp.lt.s32.totalorder %s478, 2
        %s480 = scalar_select %p479, %s478, 2
        %s481 = smul.addr %s480, 8
        %s482 = scalar_lea.vmem %s5, %s481
        %p483 = scmp.lt.s32.totalorder %s34, 0
        %s484 = scalar_select %p483, %s34, 0
        %s485 = smul.u32 3, %s484
        %p486 = scmp.eq.s32.totalorder %s33, 0
        %p487 = scmp.lt.s32.totalorder %s34, 0
        %s488 = scalar_select %p487, %s34, 0
        %s489 = scalar_select %p486, 0, %s488
        %s490 = smul.u32 3, %s489
        %s491 = ssub.s32 2, %s490
        %s492 = smul.u32 128, %s491
        %p493 = scmp.eq.s32.totalorder %s33, 0
        %p494 = scmp.lt.s32.totalorder %s34, 0
        %s495 = scalar_select %p494, %s34, 0
        %s496 = scalar_select %p493, 0, %s495
        %s497 = smul.u32 3, %s496
        %p498 = scmp.eq.s32.totalorder %s33, 0
        %p499 = scmp.eq.s32.totalorder %s34, 0
        %p500 = pnand %p498, %p499
        %p501 = pneg %p500
        // Predicated region
        $region61: #{embedding_forward.1} parent=59 // pred_check
          _
        $region62: #{embedding_forward.1} parent=59 // pred_check_branch
          %503 = sbr.rel (%p500) target = $region64
        $region63: #{embedding_forward.1} parent=59 // pred_region
          %vm504 = vcmask 253952
          %505 = vst.msk [vmem:[#allocation2] sm:$0x1] %vm504, 0.0
          %506 = vst.msk [vmem:[#allocation3] sm:$0x1] %vm504, 0.0
        $region64: #{embedding_forward.1} parent=59 // pred_fallthru
          _
        %p507 = scmp.lt.s32.totalorder %s34, 1
        %p508 = pnand %p498, %p507
        %p509 = pneg %p508
        // Predicated region
        $region65: #{embedding_forward.1} parent=59 // pred_check
          _
        $region66: #{embedding_forward.1} parent=59 // pred_check_branch
          %511 = sbr.rel (%p508) target = $region68
        $region67: #{embedding_forward.1} parent=59 // pred_region
          %v512 = vld [vmem:[%s470] sm:$0xff]
          %v513 = vld [vmem:[%s470 + $0x8] sm:$0xff]
          %v514 = vld [vmem:[%s470 + $0x10] sm:$0xff]
          %v515 = vld [vmem:[%s1] sm:$0xff]
          %v516 = vld [vmem:[%s2] sm:$0x1]
          %v518 = vlaneseq
          %v519 = vshrl.u32 %v518, 7
          %v520 = vsub.s32 0, %v519
          %v521 = vrot.slane %v516, %v520
          %vm523 = vcmask 64512
          %v525 = vsel %vm523, %v512, 0
          %v528 = vsel %vm523, %v513, 0
          %v531 = vsel %vm523, %v514, 0
          %533 = vmatprep.subr.mxu0 0.0
          %534 = vmatpush1.msra.mxu0 0.0
          %535 = vmatprep.subr.mxu0 0.0
          %536 = vmatpush1.msra.mxu0 0.0
          %537 = vmatprep.subr.mxu0 0.0
          %538 = vmatpush1.msra.mxu0 0.0
          %539 = vmatprep.subr.mxu0 0.0
          %540 = vmatpush1.msra.mxu0 0.0
          %541 = vmatprep.subr.mxu0 0.0
          %542 = vmatpush1.msra.mxu0 0.0
          %543 = vmatprep.subr.mxu0 0.0
          %544 = vmatpush1.msra.mxu0 0.0
          %545 = vmatprep.subr.mxu0 0.0
          %546 = vmatpush1.msra.mxu0 0.0
          %547 = vmatprep.subr.mxu0 0.0
          %548 = vmatpush1.msra.mxu0 0.0
          %549 = vmatprep.subr.mxu0 0.0
          %550 = vmatpush1.msra.mxu0 0.0
          %551 = vmatprep.subr.mxu0 0.0
          %552 = vmatpush1.msra.mxu0 0.0
          %553 = vmatprep.subr.mxu0 0.0
          %554 = vmatpush1.msra.mxu0 0.0
          %555 = vmatprep.subr.mxu0 0.0
          %556 = vmatpush1.msra.mxu0 0.0
          %557 = vmatprep.subr.mxu0 0.0
          %558 = vmatpush1.msra.mxu0 0.0
          %559 = vmatprep.subr.mxu0 0.0
          %560 = vmatpush1.msra.mxu0 0.0
          %561 = vmatprep.subr.mxu0 0.0
          %562 = vmatpush1.msra.mxu0 0.0
          %563 = vmatprep.subr.mxu0 0.0
          %564 = vmatpush1.msra.mxu0 %v515
          %565 = vmatprep.subr.mxu0 0.0
          %566 = vmatpush2.msra.mxu0 0.0
          %567 = vmatprep.subr.mxu0 0.0
          %568 = vmatpush2.msra.mxu0 0.0
          %569 = vmatprep.subr.mxu0 0.0
          %570 = vmatpush2.msra.mxu0 0.0
          %571 = vmatprep.subr.mxu0 0.0
          %572 = vmatpush2.msra.mxu0 0.0
          %573 = vmatprep.subr.mxu0 0.0
          %574 = vmatpush2.msra.mxu0 0.0
          %575 = vmatprep.subr.mxu0 0.0
          %576 = vmatpush2.msra.mxu0 0.0
          %577 = vmatprep.subr.mxu0 0.0
          %578 = vmatpush2.msra.mxu0 0.0
          %579 = vmatprep.subr.mxu0 0.0
          %580 = vmatpush2.msra.mxu0 0.0
          %581 = vmatprep.subr.mxu0 0.0
          %582 = vmatpush2.msra.mxu0 0.0
          %583 = vmatprep.subr.mxu0 0.0
          %584 = vmatpush2.msra.mxu0 0.0
          %585 = vmatprep.subr.mxu0 0.0
          %586 = vmatpush2.msra.mxu0 0.0
          %587 = vmatprep.subr.mxu0 0.0
          %588 = vmatpush2.msra.mxu0 0.0
          %589 = vmatprep.subr.mxu0 0.0
          %590 = vmatpush2.msra.mxu0 0.0
          %591 = vmatprep.subr.mxu0 0.0
          %592 = vmatpush2.msra.mxu0 0.0
          %593 = vmatprep.subr.mxu0 0.0
          %594 = vmatpush2.msra.mxu0 0.0
          %595 = vmatprep.subr.mxu0 0.0
          %596 = vmatpush2.msra.mxu0 0.0
          %597 = vmatprep.mubr.f32.mxu0 0.0
          %598 = vmatmul.mubr.f32.gmra.mxu0 %v525
          %v599 = vpop.f32.mrf.mxu0
          %v600 = vadd.f32 %v521, %v599
          %v601 = vpop.f32.mrf.mxu0
          %602 = vmatprep.mubr.f32.mxu0 0.0
          %603 = vmatmul.mubr.f32.gmra.mxu0 %v528
          %v604 = vpop.f32.mrf.mxu0
          %v605 = vadd.f32 %v521, %v604
          %v606 = vpop.f32.mrf.mxu0
          %607 = vmatprep.mubr.f32.mxu0 0.0
          %608 = vmatmul.mubr.f32.gmra.mxu0 %v531
          %v609 = vpop.f32.mrf.mxu0
          %v610 = vadd.f32 %v521, %v609
          %v611 = vpop.f32.mrf.mxu0
          %612 = vdwg.mxu0
          %v613 = vmax.f32 %v600, 0.0
          %v614 = vmax.f32 %v605, 0.0
          %v615 = vmax.f32 %v610, 0.0
          %v616 = vlaneseq
          %v617 = vshrl.u32 %v616, 7
          %v618 = vadd.s32 %v617, 8
          %v619 = vadd.s32 %v617, 16
          %s620 = smul.u32 %s34, 24
          %v621 = vstv %s620
          %v622 = vadd.s32 %v617, %v621
          %v623 = vadd.s32 %v618, %v621
          %v624 = vadd.s32 %v619, %v621
          %vm625 = vcmp.lt.s32.totalorder %v622, 16
          %vm626 = vcmp.lt.s32.totalorder %v623, 16
          %vm627 = vcmp.lt.s32.totalorder %v624, 16
          %v628 = vsel %vm625, 1, 0
          %v629 = vsel %vm626, 1, 0
          %v630 = vsel %vm627, 1, 0
          %vm631 = vcmp.eq.s32.totalorder %v628, 1
          %vm632 = vcmp.eq.s32.totalorder %v629, 1
          %vm633 = vcmp.eq.s32.totalorder %v630, 1
          %v634 = vsel %vm631, %v613, 0.0
          %v635 = vsel %vm632, %v614, 0.0
          %v636 = vsel %vm633, %v615, 0.0
          %v637 = vld [vmem:[#allocation2] sm:$0x1]
          %vm638 = vcmask 261120
          %v639 = vsel %vm638, %v634, 0.0
          %v640 = vsel %vm638, %v635, 0.0
          %v641 = vadd.f32 %v639, %v640
          %v642 = vsel %vm638, %v636, 0.0
          %v643 = vadd.f32 %v641, %v642
          %v644 = vrot.slane %v643, 4
          %v645 = vadd.f32 %v643, %v644
          %v646 = vrot.slane %v645, 2
          %v647 = vadd.f32 %v645, %v646
          %v648 = vrot.slane %v647, 1
          %v649 = vadd.f32 %v647, %v648
          %v650 = vadd.f32 %v637, %v649
          %vm651 = vcmask 253952
          %652 = vst.msk [vmem:[#allocation2] sm:$0x1] %vm651, %v650
          %v653 = vld [vmem:[#allocation3] sm:$0x1]
          %v654 = vmul.f32 %v634, %v634
          %v655 = vmul.f32 %v635, %v635
          %v656 = vmul.f32 %v636, %v636
          %v657 = vsel %vm638, %v654, 0.0
          %v658 = vsel %vm638, %v655, 0.0
          %v659 = vadd.f32 %v657, %v658
          %v660 = vsel %vm638, %v656, 0.0
          %v661 = vadd.f32 %v659, %v660
          %v662 = vrot.slane %v661, 4
          %v663 = vadd.f32 %v661, %v662
          %v664 = vrot.slane %v663, 2
          %v665 = vadd.f32 %v663, %v664
          %v666 = vrot.slane %v665, 1
          %v667 = vadd.f32 %v665, %v666
          %v668 = vadd.f32 %v653, %v667
          %669 = vst.msk [vmem:[#allocation3] sm:$0x1] %vm651, %v668
        $region68: #{embedding_forward.1} parent=59 // pred_fallthru
          _
        %p670 = scmp.eq.s32.totalorder %s33, 1
        %p671 = pnand %p670, %p507
        %p672 = pneg %p671
        // Predicated region
        $region69: #{embedding_forward.1} parent=59 // pred_check
          _
        $region70: #{embedding_forward.1} parent=59 // pred_check_branch
          %674 = sbr.rel (%p671) target = $region72
        $region71: #{embedding_forward.1} parent=59 // pred_region
          %v675 = vld [vmem:[#allocation2] sm:$0x1]
          %v676 = vmul.f32 %v675, 0.0625
          %v677 = vld [vmem:[#allocation3] sm:$0x1]
          %v678 = vmul.f32 %v677, 0.0625
          %v679 = vmul.f32 %v676, %v676
          %v680 = vsub.f32 %v678, %v679
          %v681 = vmax.f32 %v680, 0.0
          %v682 = vld [vmem:[%s3] sm:$0x1]
          %v683 = vadd.f32 %v681, 1e-05
          %v684 = vrsqrt.pop %v683
          %v685 = vmul.f32 %v682, %v684
          %v686 = vld [vmem:[%s4] sm:$0x1]
          %v687 = vmul.f32 %v676, %v685
          %v688 = vsub.f32 %v686, %v687
          %v689 = vld [vmem:[%s470] sm:$0xff]
          %v690 = vld [vmem:[%s470 + $0x8] sm:$0xff]
          %v691 = vld [vmem:[%s470 + $0x10] sm:$0xff]
          %v692 = vld [vmem:[%s1] sm:$0xff]
          %v693 = vld [vmem:[%s2] sm:$0x1]
          %v695 = vlaneseq
          %v696 = vshrl.u32 %v695, 7
          %v697 = vsub.s32 0, %v696
          %v698 = vrot.slane %v693, %v697
          %vm700 = vcmask 64512
          %v702 = vsel %vm700, %v689, 0
          %v705 = vsel %vm700, %v690, 0
          %v708 = vsel %vm700, %v691, 0
          %710 = vmatprep.subr.mxu0 0.0
          %711 = vmatpush1.msra.mxu0 0.0
          %712 = vmatprep.subr.mxu0 0.0
          %713 = vmatpush1.msra.mxu0 0.0
          %714 = vmatprep.subr.mxu0 0.0
          %715 = vmatpush1.msra.mxu0 0.0
          %716 = vmatprep.subr.mxu0 0.0
          %717 = vmatpush1.msra.mxu0 0.0
          %718 = vmatprep.subr.mxu0 0.0
          %719 = vmatpush1.msra.mxu0 0.0
          %720 = vmatprep.subr.mxu0 0.0
          %721 = vmatpush1.msra.mxu0 0.0
          %722 = vmatprep.subr.mxu0 0.0
          %723 = vmatpush1.msra.mxu0 0.0
          %724 = vmatprep.subr.mxu0 0.0
          %725 = vmatpush1.msra.mxu0 0.0
          %726 = vmatprep.subr.mxu0 0.0
          %727 = vmatpush1.msra.mxu0 0.0
          %728 = vmatprep.subr.mxu0 0.0
          %729 = vmatpush1.msra.mxu0 0.0
          %730 = vmatprep.subr.mxu0 0.0
          %731 = vmatpush1.msra.mxu0 0.0
          %732 = vmatprep.subr.mxu0 0.0
          %733 = vmatpush1.msra.mxu0 0.0
          %734 = vmatprep.subr.mxu0 0.0
          %735 = vmatpush1.msra.mxu0 0.0
          %736 = vmatprep.subr.mxu0 0.0
          %737 = vmatpush1.msra.mxu0 0.0
          %738 = vmatprep.subr.mxu0 0.0
          %739 = vmatpush1.msra.mxu0 0.0
          %740 = vmatprep.subr.mxu0 0.0
          %741 = vmatpush1.msra.mxu0 %v692
          %742 = vmatprep.subr.mxu0 0.0
          %743 = vmatpush2.msra.mxu0 0.0
          %744 = vmatprep.subr.mxu0 0.0
          %745 = vmatpush2.msra.mxu0 0.0
          %746 = vmatprep.subr.mxu0 0.0
          %747 = vmatpush2.msra.mxu0 0.0
          %748 = vmatprep.subr.mxu0 0.0
          %749 = vmatpush2.msra.mxu0 0.0
          %750 = vmatprep.subr.mxu0 0.0
          %751 = vmatpush2.msra.mxu0 0.0
          %752 = vmatprep.subr.mxu0 0.0
          %753 = vmatpush2.msra.mxu0 0.0
          %754 = vmatprep.subr.mxu0 0.0
          %755 = vmatpush2.msra.mxu0 0.0
          %756 = vmatprep.subr.mxu0 0.0
          %757 = vmatpush2.msra.mxu0 0.0
          %758 = vmatprep.subr.mxu0 0.0
          %759 = vmatpush2.msra.mxu0 0.0
          %760 = vmatprep.subr.mxu0 0.0
          %761 = vmatpush2.msra.mxu0 0.0
          %762 = vmatprep.subr.mxu0 0.0
          %763 = vmatpush2.msra.mxu0 0.0
          %764 = vmatprep.subr.mxu0 0.0
          %765 = vmatpush2.msra.mxu0 0.0
          %766 = vmatprep.subr.mxu0 0.0
          %767 = vmatpush2.msra.mxu0 0.0
          %768 = vmatprep.subr.mxu0 0.0
          %769 = vmatpush2.msra.mxu0 0.0
          %770 = vmatprep.subr.mxu0 0.0
          %771 = vmatpush2.msra.mxu0 0.0
          %772 = vmatprep.subr.mxu0 0.0
          %773 = vmatpush2.msra.mxu0 0.0
          %774 = vmatprep.mubr.f32.mxu0 0.0
          %775 = vmatmul.mubr.f32.gmra.mxu0 %v702
          %v776 = vpop.f32.mrf.mxu0
          %v777 = vadd.f32 %v698, %v776
          %v778 = vpop.f32.mrf.mxu0
          %779 = vmatprep.mubr.f32.mxu0 0.0
          %780 = vmatmul.mubr.f32.gmra.mxu0 %v705
          %v781 = vpop.f32.mrf.mxu0
          %v782 = vadd.f32 %v698, %v781
          %v783 = vpop.f32.mrf.mxu0
          %784 = vmatprep.mubr.f32.mxu0 0.0
          %785 = vmatmul.mubr.f32.gmra.mxu0 %v708
          %v786 = vpop.f32.mrf.mxu0
          %v787 = vadd.f32 %v698, %v786
          %v788 = vpop.f32.mrf.mxu0
          %789 = vdwg.mxu0
          %v790 = vmax.f32 %v777, 0.0
          %v791 = vmax.f32 %v782, 0.0
          %v792 = vmax.f32 %v787, 0.0
          %v794 = vlaneseq
          %v795 = vshrl.u32 %v794, 7
          %v796 = vsub.s32 0, %v795
          %v797 = vrot.slane %v685, %v796
          %v799 = vmul.f32 %v790, %v797
          %v800 = vmul.f32 %v791, %v797
          %v801 = vmul.f32 %v792, %v797
          %v803 = vlaneseq
          %v804 = vshrl.u32 %v803, 7
          %v805 = vsub.s32 0, %v804
          %v806 = vrot.slane %v688, %v805
          %v808 = vadd.f32 %v799, %v806
          %v809 = vadd.f32 %v800, %v806
          %v810 = vadd.f32 %v801, %v806
          %vm811 = vcmask 261120
          %812 = vst.msk [vmem:[%s454] sm:$0xff] %vm811, %v808
          %813 = vst.msk [vmem:[%s454 + $0x8] sm:$0xff] %vm811, %v809
          %814 = vst.msk [vmem:[%s454 + $0x10] sm:$0xff] %vm811, %v810
        $region72: #{embedding_forward.1} parent=59 // pred_fallthru
          _
        // Predicated region
        $region73: #{embedding_forward.1} parent=59 // pred_check
          _
        $region74: #{embedding_forward.1} parent=59 // pred_check_branch
          %816 = sbr.rel (%p500) target = $region76
        $region75: #{embedding_forward.1} parent=59 // pred_region
          %vm817 = vcmask 253952
          %818 = vst.msk [vmem:[#allocation4] sm:$0x1] %vm817, 0.0
          %819 = vst.msk [vmem:[#allocation5] sm:$0x1] %vm817, 0.0
        $region76: #{embedding_forward.1} parent=59 // pred_fallthru
          _
        // Predicated region
        $region77: #{embedding_forward.1} parent=59 // pred_check
          _
        $region78: #{embedding_forward.1} parent=59 // pred_check_branch
          %821 = sbr.rel (%p508) target = $region80
        $region79: #{embedding_forward.1} parent=59 // pred_region
          %v822 = vld [vmem:[%s482] sm:$0xff]
          %v823 = vld [vmem:[%s482 + $0x8] sm:$0xff]
          %v824 = vld [vmem:[%s482 + $0x10] sm:$0xff]
          %v825 = vld [vmem:[%s6] sm:$0xff]
          %v826 = vld [vmem:[%s6 + $0x8] sm:$0xf]
          %v827 = vld [vmem:[%s7] sm:$0x1]
          %v829 = vlaneseq
          %v830 = vshrl.u32 %v829, 7
          %v831 = vsub.s32 0, %v830
          %v832 = vrot.slane %v827, %v831
          %vm834 = vcmask 97280
          %v836 = vsel %vm834, %v822, 0
          %v839 = vsel %vm834, %v823, 0
          %v842 = vsel %vm834, %v824, 0
          %vm844 = vcmask 1043456
          %v846 = vsel %vm844, %v826, 0
          %848 = vmatprep.subr.mxu0 0.0
          %849 = vmatpush1.msra.mxu0 0.0
          %850 = vmatprep.subr.mxu0 0.0
          %851 = vmatpush1.msra.mxu0 0.0
          %852 = vmatprep.subr.mxu0 0.0
          %853 = vmatpush1.msra.mxu0 0.0
          %854 = vmatprep.subr.mxu0 0.0
          %855 = vmatpush1.msra.mxu0 0.0
          %856 = vmatprep.subr.mxu0 0.0
          %857 = vmatpush1.msra.mxu0 0.0
          %858 = vmatprep.subr.mxu0 0.0
          %859 = vmatpush1.msra.mxu0 0.0
          %860 = vmatprep.subr.mxu0 0.0
          %861 = vmatpush1.msra.mxu0 0.0
          %862 = vmatprep.subr.mxu0 0.0
          %863 = vmatpush1.msra.mxu0 0.0
          %864 = vmatprep.subr.mxu0 0.0
          %865 = vmatpush1.msra.mxu0 0.0
          %866 = vmatprep.subr.mxu0 0.0
          %867 = vmatpush1.msra.mxu0 0.0
          %868 = vmatprep.subr.mxu0 0.0
          %869 = vmatpush1.msra.mxu0 0.0
          %870 = vmatprep.subr.mxu0 0.0
          %871 = vmatpush1.msra.mxu0 0.0
          %872 = vmatprep.subr.mxu0 0.0
          %873 = vmatpush1.msra.mxu0 0.0
          %874 = vmatprep.subr.mxu0 0.0
          %875 = vmatpush1.msra.mxu0 0.0
          %876 = vmatprep.subr.mxu0 0.0
          %877 = vmatpush1.msra.mxu0 %v846
          %878 = vmatprep.subr.mxu0 0.0
          %879 = vmatpush1.msra.mxu0 %v825
          %880 = vmatprep.subr.mxu0 0.0
          %881 = vmatpush2.msra.mxu0 0.0
          %882 = vmatprep.subr.mxu0 0.0
          %883 = vmatpush2.msra.mxu0 0.0
          %884 = vmatprep.subr.mxu0 0.0
          %885 = vmatpush2.msra.mxu0 0.0
          %886 = vmatprep.subr.mxu0 0.0
          %887 = vmatpush2.msra.mxu0 0.0
          %888 = vmatprep.subr.mxu0 0.0
          %889 = vmatpush2.msra.mxu0 0.0
          %890 = vmatprep.subr.mxu0 0.0
          %891 = vmatpush2.msra.mxu0 0.0
          %892 = vmatprep.subr.mxu0 0.0
          %893 = vmatpush2.msra.mxu0 0.0
          %894 = vmatprep.subr.mxu0 0.0
          %895 = vmatpush2.msra.mxu0 0.0
          %896 = vmatprep.subr.mxu0 0.0
          %897 = vmatpush2.msra.mxu0 0.0
          %898 = vmatprep.subr.mxu0 0.0
          %899 = vmatpush2.msra.mxu0 0.0
          %900 = vmatprep.subr.mxu0 0.0
          %901 = vmatpush2.msra.mxu0 0.0
          %902 = vmatprep.subr.mxu0 0.0
          %903 = vmatpush2.msra.mxu0 0.0
          %904 = vmatprep.subr.mxu0 0.0
          %905 = vmatpush2.msra.mxu0 0.0
          %906 = vmatprep.subr.mxu0 0.0
          %907 = vmatpush2.msra.mxu0 0.0
          %908 = vmatprep.subr.mxu0 0.0
          %909 = vmatpush2.msra.mxu0 0.0
          %910 = vmatprep.subr.mxu0 0.0
          %911 = vmatpush2.msra.mxu0 0.0
          %912 = vmatprep.mubr.f32.mxu0 0.0
          %913 = vmatmul.mubr.f32.gmra.mxu0 %v836
          %v914 = vpop.f32.mrf.mxu0
          %v915 = vadd.f32 %v832, %v914
          %v916 = vpop.f32.mrf.mxu0
          %917 = vmatprep.mubr.f32.mxu0 0.0
          %918 = vmatmul.mubr.f32.gmra.mxu0 %v839
          %v919 = vpop.f32.mrf.mxu0
          %v920 = vadd.f32 %v832, %v919
          %v921 = vpop.f32.mrf.mxu0
          %922 = vmatprep.mubr.f32.mxu0 0.0
          %923 = vmatmul.mubr.f32.gmra.mxu0 %v842
          %v924 = vpop.f32.mrf.mxu0
          %v925 = vadd.f32 %v832, %v924
          %v926 = vpop.f32.mrf.mxu0
          %927 = vdwg.mxu0
          %v928 = vmax.f32 %v915, 0.0
          %v929 = vmax.f32 %v920, 0.0
          %v930 = vmax.f32 %v925, 0.0
          %v931 = vlaneseq
          %v932 = vshrl.u32 %v931, 7
          %v933 = vadd.s32 %v932, 8
          %v934 = vadd.s32 %v932, 16
          %s935 = smul.u32 %s34, 24
          %v936 = vstv %s935
          %v937 = vadd.s32 %v932, %v936
          %v938 = vadd.s32 %v933, %v936
          %v939 = vadd.s32 %v934, %v936
          %vm940 = vcmp.lt.s32.totalorder %v937, 24
          %vm941 = vcmp.lt.s32.totalorder %v938, 24
          %vm942 = vcmp.lt.s32.totalorder %v939, 24
          %v943 = vsel %vm940, 1, 0
          %v944 = vsel %vm941, 1, 0
          %v945 = vsel %vm942, 1, 0
          %vm946 = vcmp.eq.s32.totalorder %v943, 1
          %vm947 = vcmp.eq.s32.totalorder %v944, 1
          %vm948 = vcmp.eq.s32.totalorder %v945, 1
          %v949 = vsel %vm946, %v928, 0.0
          %v950 = vsel %vm947, %v929, 0.0
          %v951 = vsel %vm948, %v930, 0.0
          %v952 = vld [vmem:[#allocation4] sm:$0x1]
          %vm953 = vcmask 261120
          %v954 = vsel %vm953, %v949, 0.0
          %v955 = vsel %vm953, %v950, 0.0
          %v956 = vadd.f32 %v954, %v955
          %v957 = vsel %vm953, %v951, 0.0
          %v958 = vadd.f32 %v956, %v957
          %v959 = vrot.slane %v958, 4
          %v960 = vadd.f32 %v958, %v959
          %v961 = vrot.slane %v960, 2
          %v962 = vadd.f32 %v960, %v961
          %v963 = vrot.slane %v962, 1
          %v964 = vadd.f32 %v962, %v963
          %v965 = vadd.f32 %v952, %v964
          %vm966 = vcmask 253952
          %967 = vst.msk [vmem:[#allocation4] sm:$0x1] %vm966, %v965
          %v968 = vld [vmem:[#allocation5] sm:$0x1]
          %v969 = vmul.f32 %v949, %v949
          %v970 = vmul.f32 %v950, %v950
          %v971 = vmul.f32 %v951, %v951
          %v972 = vsel %vm953, %v969, 0.0
          %v973 = vsel %vm953, %v970, 0.0
          %v974 = vadd.f32 %v972, %v973
          %v975 = vsel %vm953, %v971, 0.0
          %v976 = vadd.f32 %v974, %v975
          %v977 = vrot.slane %v976, 4
          %v978 = vadd.f32 %v976, %v977
          %v979 = vrot.slane %v978, 2
          %v980 = vadd.f32 %v978, %v979
          %v981 = vrot.slane %v980, 1
          %v982 = vadd.f32 %v980, %v981
          %v983 = vadd.f32 %v968, %v982
          %984 = vst.msk [vmem:[#allocation5] sm:$0x1] %vm966, %v983
        $region80: #{embedding_forward.1} parent=59 // pred_fallthru
          _
        // Predicated region
        $region81: #{embedding_forward.1} parent=59 // pred_check
          _
        $region82: #{embedding_forward.1} parent=59 // pred_check_branch
          %986 = sbr.rel (%p671) target = $region84
        $region83: #{embedding_forward.1} parent=59 // pred_region
          %v987 = vld [vmem:[#allocation4] sm:$0x1]
          %v988 = vmul.f32 %v987, 0.041666668
          %v989 = vld [vmem:[#allocation5] sm:$0x1]
          %v990 = vmul.f32 %v989, 0.041666668
          %v991 = vmul.f32 %v988, %v988
          %v992 = vsub.f32 %v990, %v991
          %v993 = vmax.f32 %v992, 0.0
          %v994 = vld [vmem:[%s8] sm:$0x1]
          %v995 = vadd.f32 %v993, 1e-05
          %v996 = vrsqrt.pop %v995
          %v997 = vmul.f32 %v994, %v996
          %v998 = vld [vmem:[%s9] sm:$0x1]
          %v999 = vmul.f32 %v988, %v997
          %v1000 = vsub.f32 %v998, %v999
          %v1001 = vld [vmem:[%s482] sm:$0xff]
          %v1002 = vld [vmem:[%s482 + $0x8] sm:$0xff]
          %v1003 = vld [vmem:[%s482 + $0x10] sm:$0xff]
          %v1004 = vld [vmem:[%s6] sm:$0xff]
          %v1005 = vld [vmem:[%s6 + $0x8] sm:$0xf]
          %v1006 = vld [vmem:[%s7] sm:$0x1]
          %v1008 = vlaneseq
          %v1009 = vshrl.u32 %v1008, 7
          %v1010 = vsub.s32 0, %v1009
          %v1011 = vrot.slane %v1006, %v1010
          %vm1013 = vcmask 97280
          %v1015 = vsel %vm1013, %v1001, 0
          %v1018 = vsel %vm1013, %v1002, 0
          %v1021 = vsel %vm1013, %v1003, 0
          %vm1023 = vcmask 1043456
          %v1025 = vsel %vm1023, %v1005, 0
          %1027 = vmatprep.subr.mxu0 0.0
          %1028 = vmatpush1.msra.mxu0 0.0
          %1029 = vmatprep.subr.mxu0 0.0
          %1030 = vmatpush1.msra.mxu0 0.0
          %1031 = vmatprep.subr.mxu0 0.0
          %1032 = vmatpush1.msra.mxu0 0.0
          %1033 = vmatprep.subr.mxu0 0.0
          %1034 = vmatpush1.msra.mxu0 0.0
          %1035 = vmatprep.subr.mxu0 0.0
          %1036 = vmatpush1.msra.mxu0 0.0
          %1037 = vmatprep.subr.mxu0 0.0
          %1038 = vmatpush1.msra.mxu0 0.0
          %1039 = vmatprep.subr.mxu0 0.0
          %1040 = vmatpush1.msra.mxu0 0.0
          %1041 = vmatprep.subr.mxu0 0.0
          %1042 = vmatpush1.msra.mxu0 0.0
          %1043 = vmatprep.subr.mxu0 0.0
          %1044 = vmatpush1.msra.mxu0 0.0
          %1045 = vmatprep.subr.mxu0 0.0
          %1046 = vmatpush1.msra.mxu0 0.0
          %1047 = vmatprep.subr.mxu0 0.0
          %1048 = vmatpush1.msra.mxu0 0.0
          %1049 = vmatprep.subr.mxu0 0.0
          %1050 = vmatpush1.msra.mxu0 0.0
          %1051 = vmatprep.subr.mxu0 0.0
          %1052 = vmatpush1.msra.mxu0 0.0
          %1053 = vmatprep.subr.mxu0 0.0
          %1054 = vmatpush1.msra.mxu0 0.0
          %1055 = vmatprep.subr.mxu0 0.0
          %1056 = vmatpush1.msra.mxu0 %v1025
          %1057 = vmatprep.subr.mxu0 0.0
          %1058 = vmatpush1.msra.mxu0 %v1004
          %1059 = vmatprep.subr.mxu0 0.0
          %1060 = vmatpush2.msra.mxu0 0.0
          %1061 = vmatprep.subr.mxu0 0.0
          %1062 = vmatpush2.msra.mxu0 0.0
          %1063 = vmatprep.subr.mxu0 0.0
          %1064 = vmatpush2.msra.mxu0 0.0
          %1065 = vmatprep.subr.mxu0 0.0
          %1066 = vmatpush2.msra.mxu0 0.0
          %1067 = vmatprep.subr.mxu0 0.0
          %1068 = vmatpush2.msra.mxu0 0.0
          %1069 = vmatprep.subr.mxu0 0.0
          %1070 = vmatpush2.msra.mxu0 0.0
          %1071 = vmatprep.subr.mxu0 0.0
          %1072 = vmatpush2.msra.mxu0 0.0
          %1073 = vmatprep.subr.mxu0 0.0
          %1074 = vmatpush2.msra.mxu0 0.0
          %1075 = vmatprep.subr.mxu0 0.0
          %1076 = vmatpush2.msra.mxu0 0.0
          %1077 = vmatprep.subr.mxu0 0.0
          %1078 = vmatpush2.msra.mxu0 0.0
          %1079 = vmatprep.subr.mxu0 0.0
          %1080 = vmatpush2.msra.mxu0 0.0
          %1081 = vmatprep.subr.mxu0 0.0
          %1082 = vmatpush2.msra.mxu0 0.0
          %1083 = vmatprep.subr.mxu0 0.0
          %1084 = vmatpush2.msra.mxu0 0.0
          %1085 = vmatprep.subr.mxu0 0.0
          %1086 = vmatpush2.msra.mxu0 0.0
          %1087 = vmatprep.subr.mxu0 0.0
          %1088 = vmatpush2.msra.mxu0 0.0
          %1089 = vmatprep.subr.mxu0 0.0
          %1090 = vmatpush2.msra.mxu0 0.0
          %1091 = vmatprep.mubr.f32.mxu0 0.0
          %1092 = vmatmul.mubr.f32.gmra.mxu0 %v1015
          %v1093 = vpop.f32.mrf.mxu0
          %v1094 = vadd.f32 %v1011, %v1093
          %v1095 = vpop.f32.mrf.mxu0
          %1096 = vmatprep.mubr.f32.mxu0 0.0
          %1097 = vmatmul.mubr.f32.gmra.mxu0 %v1018
          %v1098 = vpop.f32.mrf.mxu0
          %v1099 = vadd.f32 %v1011, %v1098
          %v1100 = vpop.f32.mrf.mxu0
          %1101 = vmatprep.mubr.f32.mxu0 0.0
          %1102 = vmatmul.mubr.f32.gmra.mxu0 %v1021
          %v1103 = vpop.f32.mrf.mxu0
          %v1104 = vadd.f32 %v1011, %v1103
          %v1105 = vpop.f32.mrf.mxu0
          %1106 = vdwg.mxu0
          %v1107 = vmax.f32 %v1094, 0.0
          %v1108 = vmax.f32 %v1099, 0.0
          %v1109 = vmax.f32 %v1104, 0.0
          %v1111 = vlaneseq
          %v1112 = vshrl.u32 %v1111, 7
          %v1113 = vsub.s32 0, %v1112
          %v1114 = vrot.slane %v997, %v1113
          %v1116 = vmul.f32 %v1107, %v1114
          %v1117 = vmul.f32 %v1108, %v1114
          %v1118 = vmul.f32 %v1109, %v1114
          %v1120 = vlaneseq
          %v1121 = vshrl.u32 %v1120, 7
          %v1122 = vsub.s32 0, %v1121
          %v1123 = vrot.slane %v1000, %v1122
          %v1125 = vadd.f32 %v1116, %v1123
          %v1126 = vadd.f32 %v1117, %v1123
          %v1127 = vadd.f32 %v1118, %v1123
          %vm1128 = vcmask 261120
          %1129 = vst.msk [vmem:[%s461] sm:$0xff] %vm1128, %v1125
          %1130 = vst.msk [vmem:[%s461 + $0x8] sm:$0xff] %vm1128, %v1126
          %1131 = vst.msk [vmem:[%s461 + $0x10] sm:$0xff] %vm1128, %v1127
        $region84: #{embedding_forward.1} parent=59 // pred_fallthru
          _
        %s1132 = sand.u32 %s285, 1
        %s1133 = scalar_lea.sflag [#allocation7], %s1132
        %s1134 = sand.u32 %s285, 1
        %s1135 = smul.addr %s1134, 24
        %s1136 = scalar_lea.vmem [#allocation6], %s1135
        %s1137 = sand.u32 %s319, 1
        %s1138 = scalar_lea.sflag [#allocation9], %s1137
        %s1139 = sand.u32 %s319, 1
        %s1140 = smul.addr %s1139, 24
        %s1141 = scalar_lea.vmem [#allocation8], %s1140
        // Predicated region
        $region85: #{embedding_forward.1} parent=59 // pred_check
          %p1142 = pneg %p295
        $region86: #{embedding_forward.1} parent=59 // pred_check_branch
          %1144 = sbr.rel (%p1142) target = $region88
        $region87: #{embedding_forward.1} parent=59 // pred_region
          %p1145 = scmp.eq.s32.totalorder %s33, 0
          %p1146 = scmp.lt.s32.totalorder %s34, 0
          %s1147 = scalar_select %p1146, %s34, 0
          %s1148 = scalar_select %p1145, 0, %s1147
          %s1149 = smul.u32 3, %s1148
          %s1150 = ssub.s32 2, %s1149
          %s1151 = smul.u32 128, %s1150
          %s1153 = ssub.s32 384, %s1151
          %1154 = vsyncadd %s1133, %s1153
          %p1155 = scmp.ne.s32.totalorder 0, %s1151
          %s1156 = smul.addr %s1149, 128
          %s1157 = scalar_lea.hbm %s10, %s1156
          %s1158 = smul.u32 8, %s1150
          %s1159 = sshll.u32 %s1136, 4
          %s1160 = int_to_ptr.vmem [resolvable:$true] %s1159
          %s1161 = sshll.u32 %s1158, 4
          %1165 = dma.vmem_to_hbm [thread:$0]  (%p1155), %s1160, %s1161, %s1157, %s1133, 128, 128, 8
        $region88: #{embedding_forward.1} parent=59 // pred_fallthru
          _
        // Predicated region
        $region89: #{embedding_forward.1} parent=59 // pred_check
          %p1166 = pneg %p329
        $region90: #{embedding_forward.1} parent=59 // pred_check_branch
          %1168 = sbr.rel (%p1166) target = $region92
        $region91: #{embedding_forward.1} parent=59 // pred_region
          %p1169 = scmp.eq.s32.totalorder %s33, 0
          %p1170 = scmp.lt.s32.totalorder %s34, 0
          %s1171 = scalar_select %p1170, %s34, 0
          %s1172 = scalar_select %p1169, 0, %s1171
          %s1173 = smul.u32 3, %s1172
          %s1175 = ssub.s32 384, 384
          %1176 = vsyncadd %s1138, %s1175
          %s1177 = smul.addr %s1173, 128
          %s1178 = scalar_lea.hbm %s11, %s1177
          %s1179 = sshll.u32 %s1141, 4
          %s1180 = int_to_ptr.vmem [resolvable:$true] %s1179
          %1185 = dma.vmem_to_hbm [thread:$0]  %s1180, 384, %s1178, %s1138, 128, 128, 8
        $region92: #{embedding_forward.1} parent=59 // pred_fallthru
          _
      $region60: #{embedding_forward.1} parent=5 // pred_fallthru
        _
      %p1186 = scmp.le.s32.totalorder 2, %s24
      // Predicated region
      $region93: #{embedding_forward.1} parent=5 // pred_check
        %p1187 = pneg %p1186
      $region94: #{embedding_forward.1} parent=5 // pred_check_branch
        %1189 = sbr.rel (%p1187) target = $region96
      $region95: #{embedding_forward.1} parent=5 // pred_region
        %s1190 = ssub.s32 %s24, 2
        // Predicated region
        $region97: #{embedding_forward.1} parent=95 // pred_check
          %p1191 = pneg %p301
        $region98: #{embedding_forward.1} parent=95 // pred_check_branch
          %1193 = sbr.rel (%p1191) target = $region100
        $region99: #{embedding_forward.1} parent=95 // pred_region
          %s1194 = sand.u32 %s286, 1
          %s1195 = scalar_lea.sflag [#allocation7], %s1194
          %s1196 = sand.u32 %s286, 1
          %s1197 = smul.addr %s1196, 24
          %s1198 = scalar_lea.vmem [#allocation6], %s1197
          %1199 = dma.done %s1195, 384
        $region100: #{embedding_forward.1} parent=95 // pred_fallthru
          _
        // Predicated region
        $region101: #{embedding_forward.1} parent=95 // pred_check
          %p1200 = pneg %p335
        $region102: #{embedding_forward.1} parent=95 // pred_check_branch
          %1202 = sbr.rel (%p1200) target = $region104
        $region103: #{embedding_forward.1} parent=95 // pred_region
          %s1203 = sand.u32 %s320, 1
          %s1204 = scalar_lea.sflag [#allocation9], %s1203
          %s1205 = sand.u32 %s320, 1
          %s1206 = smul.addr %s1205, 24
          %s1207 = scalar_lea.vmem [#allocation8], %s1206
          %1208 = dma.done %s1204, 384
        $region104: #{embedding_forward.1} parent=95 // pred_fallthru
          _
      $region96: #{embedding_forward.1} parent=5 // pred_fallthru
        _
    $region6: #{embedding_forward.1} parent=1 // loop_footer
      %s28 = sadd.s32 1, %s24
    $region7: #{embedding_forward.1} parent=1 // loop_footer_branch
      %23 = sbr.rel target = $region3
    $region8: #{embedding_forward.1} parent=1 // loop_exit
      _
    %1209 = vsyncpa [#allocation7], 1
    %s1210 = scalar_lea.sflag [#allocation7], 1
    %1211 = vsyncpa %s1210, 1
    %1212 = vsyncpa [#allocation9], 1
    %s1213 = scalar_lea.sflag [#allocation9], 1
    %1214 = vsyncpa %s1213, 1

</llo_original>
